<compile_context>
chip_gen: v7x
topology: tpu7x:2x2x1
jax: 0.10.0
libtpu: 0.0.40
codegen_flags: <defaults>
</compile_context>

<pallas_src>
import jax
import jax.numpy as jnp
from jax.experimental import pallas as pl
from jax.experimental.pallas import tpu as pltpu

B = 2                 # batch
L = 96                # input length -> (96/2/2) * 32 = 768 = Linear in_features
L2 = L // 2           # 48  (after pool1)
L4 = L // 4           # 24  (after pool2)
C1, C2 = 16, 32
K = 5
KP = 8                # conv1 taps padded 5 -> 8 (taps 5..7 are zero)
PAD = 2
NCLASS = 2
LPA = 56              # 8-aligned per-batch row stride of the padded pool1
                      # scratch (>= L2 + 2*PAD = 52)

# Row offsets inside the single packed weight buffer (144 x 32, f32):
#   rows 0:8    cols 0:16 : conv1 weight (KP, C1), taps 5..7 zero
#   row  8      cols 0:16 : conv1 bias
#   row  9      cols 0:32 : conv2 bias
#   row  10     cols 0:2  : linear bias
#   rows 16:96  cols 0:32 : conv2 weight (K*C1, C2), row = k*C1 + ci
#   rows 96:144 cols 0:32 : linear weight (NCLASS*L4, C2), row = n*L4 + l
W2_OFF = 16
W3_OFF = W2_OFF + K * C1          # 96
WROWS = W3_OFF + NCLASS * L4      # 144


def cnn_kernel(x1_ref, w_ref, out_ref, p1pad_ref):
    # ---- unpack packed params (static sub-tile slices of one VMEM buffer) ----
    w1 = w_ref[0:KP, 0:C1]                    # (8, 16)
    b1 = w_ref[KP:KP + 1, 0:C1]               # (1, 16)
    b2 = w_ref[KP + 1:KP + 2, 0:C2]           # (1, 32)
    b3 = w_ref[KP + 2:KP + 3, 0:NCLASS]       # (1, 2)

    # ---- conv1 (1->16, k5, p2) + ReLU + maxpool(2), fused ----
    # maxpool(relu(conv + b)) == relu(max(conv_even, conv_odd) + b); even/odd
    # output rows come straight from stride-2 sublane loads of the im2col'd
    # input ref -> two MXU GEMMs, no intermediate activation store.
    y1e = jnp.dot(x1_ref[pl.ds(0, B * L2, 2), :], w1,
                  preferred_element_type=jnp.float32)            # (96, 16)
    y1o = jnp.dot(x1_ref[pl.ds(1, B * L2, 2), :], w1,
                  preferred_element_type=jnp.float32)            # (96, 16)
    p1 = jnp.maximum(jnp.maximum(y1e, y1o) + b1, 0.0)            # (96,16), row=b*48+l

    # ---- pool1 -> zero-padded, 8-aligned per-batch scratch ----
    # batch b lives at rows [b*56, b*56+52); zero ONLY the 2 pad rows per edge.
    for b in range(B):
        base = b * LPA
        p1pad_ref[base:base + PAD, :] = jnp.zeros((PAD, C1), jnp.float32)
        p1pad_ref[base + PAD + L2:base + PAD + L2 + PAD, :] = \
            jnp.zeros((PAD, C1), jnp.float32)
        p1pad_ref[base + PAD:base + PAD + L2, :] = p1[b * L2:(b + 1) * L2, :]

    # ---- conv2 (16->32, k5, p2) + ReLU + maxpool(2): tap-accumulated GEMMs ----
    # For tap k, even/odd pooled output rows need padded rows {k+2j}/{k+1+2j}:
    # stride-2 sublane loads from the aligned scratch (same pattern for every
    # batch since the per-batch stride 56 is a multiple of 8).  No im2col lane
    # concatenation, no (96,80) materialization, no y2 scratch round trip.
    acc_e = jnp.zeros((B * L4, C2), jnp.float32)
    acc_o = jnp.zeros((B * L4, C2), jnp.float32)
    for k in range(K):
        w2k = w_ref[W2_OFF + k * C1:W2_OFF + (k + 1) * C1, 0:C2]   # (16, 32)
        xe = jnp.concatenate(
            [p1pad_ref[pl.ds(b * LPA + k, L4, 2), :] for b in range(B)], axis=0)
        xo = jnp.concatenate(
            [p1pad_ref[pl.ds(b * LPA + k + 1, L4, 2), :] for b in range(B)], axis=0)
        acc_e = acc_e + jnp.dot(xe, w2k, preferred_element_type=jnp.float32)
        acc_o = acc_o + jnp.dot(xo, w2k, preferred_element_type=jnp.float32)
    p2 = jnp.maximum(jnp.maximum(acc_e, acc_o) + b2, 0.0)        # (48,32), row=b*24+l

    # ---- Linear(768->2) vectorized over (batch, class); one (2,2) store ----
    # torch view(B,-1) flatten order (c*L4 + l) is baked into the host-side
    # weight packing, so no in-kernel flatten/relayout is needed.
    w3 = w_ref[W3_OFF:W3_OFF + NCLASS * L4, 0:C2].reshape(NCLASS, L4, C2)
    prod = p2.reshape(B, 1, L4, C2) * w3[None, :, :, :]          # (B, NCLASS, L4, C2)
    out_ref[...] = jnp.sum(jnp.sum(prod, axis=3), axis=2) + b3


@jax.jit
def cnn_forward(x, w1, b1, w2, b2, w3, b3):
    # Host-side (jitted, XLA-fused) prep: pad + im2col conv1's input and pack
    # EVERY weight-side operand into a single (144,32) buffer so the kernel
    # takes exactly two inputs.  In a real model the weight packing is done once.
    xp = jnp.pad(x[:, 0, :], ((0, 0), (PAD, PAD)))                    # (B, L+4)
    x1 = jnp.stack([xp[:, k:k + L] for k in range(K)], axis=-1)       # (B, L, 5)
    x1 = jnp.pad(x1, ((0, 0), (0, 0), (0, KP - K))).reshape(B * L, KP)

    W = jnp.zeros((WROWS, C2), jnp.float32)
    W = W.at[0:K, 0:C1].set(w1[:, 0, :].T)            # conv1 weight (5,16)
    W = W.at[KP, 0:C1].set(b1)
    W = W.at[KP + 1, 0:C2].set(b2)
    W = W.at[KP + 2, 0:NCLASS].set(b3)
    # conv2 weight -> (K*C1, C2); row = k*C1 + ci
    W = W.at[W2_OFF:W2_OFF + K * C1, :].set(
        jnp.transpose(w2, (2, 1, 0)).reshape(K * C1, C2))
    # linear weight -> (NCLASS*L4, C2); row n*L4+l holds w3[n, c*L4 + l]
    W = W.at[W3_OFF:W3_OFF + NCLASS * L4, :].set(
        jnp.transpose(w3.reshape(NCLASS, C2, L4), (0, 2, 1)).reshape(NCLASS * L4, C2))

    vmem = pl.BlockSpec(memory_space=pltpu.MemorySpace.VMEM)
    # Single invocation, no grid (problem is tiny).  If batch grows, add a
    # leading grid over batch with dimension_semantics=("parallel",) so the
    # second TensorCore on v7x is used and the MXU M dimension fills up.
    return pl.pallas_call(
        cnn_kernel,
        out_shape=jax.ShapeDtypeStruct((B, NCLASS), jnp.float32),
        in_specs=[vmem, vmem],
        out_specs=vmem,
        scratch_shapes=[pltpu.VMEM((B * LPA, C1), jnp.float32)],   # padded pool1
        cost_estimate=pl.CostEstimate(
            flops=600_000, transcendentals=0, bytes_accessed=40_000),
    )(x1, W)


def ref_forward(x, w1, b1, w2, b2, w3, b3):
    """Pure-JAX reference (mirrors the PyTorch module)."""
    def conv1d(inp, w, b):
        y = jax.lax.conv_general_dilated(
            inp, w, window_strides=(1,), padding=[(PAD, PAD)],
            dimension_numbers=("NCH", "OIH", "NCH"))
        return y + b[None, :, None]

    y = jax.nn.relu(conv1d(x, w1, b1))
    y = jnp.max(y.reshape(B, C1, -1, 2), axis=-1)
    y = jax.nn.relu(conv1d(y, w2, b2))
    y = jnp.max(y.reshape(B, C2, -1, 2), axis=-1)
    flat = y.reshape(B, -1)
    return flat @ w3.T + b3[None, :]


if __name__ == "__main__":
    key = jax.random.PRNGKey(0)
    k1, k2, k3, k4, k5, k6, kx = jax.random.split(key, 7)

    def uniform(k, shape, fan_in):
        bound = 1.0 / (fan_in ** 0.5)
        return jax.random.uniform(k, shape, jnp.float32, -bound, bound)

    # Deterministic parameter init (PyTorch-style fan-in uniform bounds).
    w1 = uniform(k1, (C1, 1, K), 1 * K)            # conv1.weight
    b1 = uniform(k2, (C1,), 1 * K)                 # conv1.bias
    w2 = uniform(k3, (C2, C1, K), C1 * K)          # conv2.weight
    b2 = uniform(k4, (C2,), C1 * K)                # conv2.bias
    w3 = uniform(k5, (NCLASS, C2 * L4), C2 * L4)   # out.weight (2, 768)
    b3 = uniform(k6, (NCLASS,), C2 * L4)           # out.bias

    x = jax.random.normal(kx, (B, 1, L), jnp.float32)

    out = cnn_forward(x, w1, b1, w2, b2, w3, b3)
    jax.block_until_ready(out)

    ref = ref_forward(x, w1, b1, w2, b2, w3, b3)
    assert out.shape == (B, NCLASS)
    assert jnp.allclose(out, ref, atol=1e-4, rtol=1e-4), (out, ref)
    print("KERNEL_OK")
</pallas_src>

<mosaic_0001>
module attributes {stable_mosaic.version = 11 : i64} {
  func.func @cnn_kernel(%arg0: memref<192x8xf32, #tpu.memory_space<vmem>>, %arg1: memref<144x32xf32, #tpu.memory_space<vmem>>, %arg2: memref<2x2xf32, #tpu.memory_space<vmem>>, %arg3: memref<112x16xf32, #tpu.memory_space<vmem>>) attributes {dimension_semantics = [], scalar_prefetch = 0 : i64, scratch_operands = 1 : i64, tpu.core_type = #tpu.core_type<tc>} {
    %c0 = arith.constant 0 : index
    %c0_0 = arith.constant 0 : index
    %0 = vector.load %arg1[%c0, %c0_0] : memref<144x32xf32, #tpu.memory_space<vmem>>, vector<8x16xf32>
    %c8 = arith.constant 8 : index
    %c0_1 = arith.constant 0 : index
    %1 = vector.load %arg1[%c8, %c0_1] : memref<144x32xf32, #tpu.memory_space<vmem>>, vector<1x16xf32>
    %c9 = arith.constant 9 : index
    %c0_2 = arith.constant 0 : index
    %2 = vector.load %arg1[%c9, %c0_2] : memref<144x32xf32, #tpu.memory_space<vmem>>, vector<1x32xf32>
    %c10 = arith.constant 10 : index
    %c0_3 = arith.constant 0 : index
    %3 = vector.load %arg1[%c10, %c0_3] : memref<144x32xf32, #tpu.memory_space<vmem>>, vector<1x2xf32>
    %c0_4 = arith.constant 0 : index
    %c0_5 = arith.constant 0 : index
    %4 = tpu.strided_load %arg0[%c0_4, %c0_5] {strides = array<i32: 2, 1>} : memref<192x8xf32, #tpu.memory_space<vmem>>, vector<96x8xf32>
    %cst = arith.constant dense<0.000000e+00> : vector<96x16xf32>
    %5 = tpu.matmul %4, %0, %cst {dimension_numbers = #tpu.dot_dimension_numbers<[1], [0], [0], [1], [0, 0, 1, 1], [], []>} : vector<96x8xf32>, vector<8x16xf32>, vector<96x16xf32> -> vector<96x16xf32>
    %c1 = arith.constant 1 : index
    %c0_6 = arith.constant 0 : index
    %6 = tpu.strided_load %arg0[%c1, %c0_6] {strides = array<i32: 2, 1>} : memref<192x8xf32, #tpu.memory_space<vmem>>, vector<96x8xf32>
    %cst_7 = arith.constant dense<0.000000e+00> : vector<96x16xf32>
    %7 = tpu.matmul %6, %0, %cst_7 {dimension_numbers = #tpu.dot_dimension_numbers<[1], [0], [0], [1], [0, 0, 1, 1], [], []>} : vector<96x8xf32>, vector<8x16xf32>, vector<96x16xf32> -> vector<96x16xf32>
    %8 = arith.maximumf %5, %7 : vector<96x16xf32>
    %9 = vector.broadcast %1 : vector<1x16xf32> to vector<96x16xf32>
    %10 = arith.addf %8, %9 : vector<96x16xf32>
    %cst_8 = arith.constant 0.000000e+00 : f32
    %11 = vector.broadcast %cst_8 : f32 to vector<96x16xf32>
    %12 = arith.maximumf %10, %11 : vector<96x16xf32>
    %cst_9 = arith.constant 0.000000e+00 : f32
    %13 = vector.broadcast %cst_9 : f32 to vector<2x16xf32>
    %c0_10 = arith.constant 0 : index
    %c0_11 = arith.constant 0 : index
    %14 = vector.load %arg3[%c0_10, %c0_11] : memref<112x16xf32, #tpu.memory_space<vmem>>, vector<2x16xf32>
    tpu.vector_store %arg3[%c0_10, %c0_11], %13 {strides = array<i32>} : memref<112x16xf32, #tpu.memory_space<vmem>>, vector<2x16xf32>,
    %cst_12 = arith.constant 0.000000e+00 : f32
    %15 = vector.broadcast %cst_12 : f32 to vector<2x16xf32>
    %c50 = arith.constant 50 : index
    %c0_13 = arith.constant 0 : index
    %16 = vector.load %arg3[%c50, %c0_13] : memref<112x16xf32, #tpu.memory_space<vmem>>, vector<2x16xf32>
    tpu.vector_store %arg3[%c50, %c0_13], %15 {strides = array<i32>} : memref<112x16xf32, #tpu.memory_space<vmem>>, vector<2x16xf32>,
    %17 = vector.extract_strided_slice %12 {offsets = [0, 0], sizes = [48, 16], strides = [1, 1]} : vector<96x16xf32> to vector<48x16xf32>
    %c2 = arith.constant 2 : index
    %c0_14 = arith.constant 0 : index
    %18 = vector.load %arg3[%c2, %c0_14] : memref<112x16xf32, #tpu.memory_space<vmem>>, vector<48x16xf32>
    tpu.vector_store %arg3[%c2, %c0_14], %17 {strides = array<i32>} : memref<112x16xf32, #tpu.memory_space<vmem>>, vector<48x16xf32>,
    %cst_15 = arith.constant 0.000000e+00 : f32
    %19 = vector.broadcast %cst_15 : f32 to vector<2x16xf32>
    %c56 = arith.constant 56 : index
    %c0_16 = arith.constant 0 : index
    %20 = vector.load %arg3[%c56, %c0_16] : memref<112x16xf32, #tpu.memory_space<vmem>>, vector<2x16xf32>
    tpu.vector_store %arg3[%c56, %c0_16], %19 {strides = array<i32>} : memref<112x16xf32, #tpu.memory_space<vmem>>, vector<2x16xf32>,
    %cst_17 = arith.constant 0.000000e+00 : f32
    %21 = vector.broadcast %cst_17 : f32 to vector<2x16xf32>
    %c106 = arith.constant 106 : index
    %c0_18 = arith.constant 0 : index
    %22 = vector.load %arg3[%c106, %c0_18] : memref<112x16xf32, #tpu.memory_space<vmem>>, vector<2x16xf32>
    tpu.vector_store %arg3[%c106, %c0_18], %21 {strides = array<i32>} : memref<112x16xf32, #tpu.memory_space<vmem>>, vector<2x16xf32>,
    %23 = vector.extract_strided_slice %12 {offsets = [48, 0], sizes = [48, 16], strides = [1, 1]} : vector<96x16xf32> to vector<48x16xf32>
    %c58 = arith.constant 58 : index
    %c0_19 = arith.constant 0 : index
    %24 = vector.load %arg3[%c58, %c0_19] : memref<112x16xf32, #tpu.memory_space<vmem>>, vector<48x16xf32>
    tpu.vector_store %arg3[%c58, %c0_19], %23 {strides = array<i32>} : memref<112x16xf32, #tpu.memory_space<vmem>>, vector<48x16xf32>,
    %cst_20 = arith.constant 0.000000e+00 : f32
    %25 = vector.broadcast %cst_20 : f32 to vector<48x32xf32>
    %cst_21 = arith.constant 0.000000e+00 : f32
    %26 = vector.broadcast %cst_21 : f32 to vector<48x32xf32>
    %c16 = arith.constant 16 : index
    %c0_22 = arith.constant 0 : index
    %27 = vector.load %arg1[%c16, %c0_22] : memref<144x32xf32, #tpu.memory_space<vmem>>, vector<16x32xf32>
    %c0_23 = arith.constant 0 : index
    %c0_24 = arith.constant 0 : index
    %28 = tpu.strided_load %arg3[%c0_23, %c0_24] {strides = array<i32: 2, 1>} : memref<112x16xf32, #tpu.memory_space<vmem>>, vector<24x16xf32>
    %c56_25 = arith.constant 56 : index
    %c0_26 = arith.constant 0 : index
    %29 = tpu.strided_load %arg3[%c56_25, %c0_26] {strides = array<i32: 2, 1>} : memref<112x16xf32, #tpu.memory_space<vmem>>, vector<24x16xf32>
    %30 = tpu.concatenate %28, %29 in 0 : vector<24x16xf32>, vector<24x16xf32> -> vector<48x16xf32>
    %c1_27 = arith.constant 1 : index
    %c0_28 = arith.constant 0 : index
    %31 = tpu.strided_load %arg3[%c1_27, %c0_28] {strides = array<i32: 2, 1>} : memref<112x16xf32, #tpu.memory_space<vmem>>, vector<24x16xf32>
    %c57 = arith.constant 57 : index
    %c0_29 = arith.constant 0 : index
    %32 = tpu.strided_load %arg3[%c57, %c0_29] {strides = array<i32: 2, 1>} : memref<112x16xf32, #tpu.memory_space<vmem>>, vector<24x16xf32>
    %33 = tpu.concatenate %31, %32 in 0 : vector<24x16xf32>, vector<24x16xf32> -> vector<48x16xf32>
    %cst_30 = arith.constant dense<0.000000e+00> : vector<48x32xf32>
    %34 = tpu.matmul %30, %27, %cst_30 {dimension_numbers = #tpu.dot_dimension_numbers<[1], [0], [0], [1], [0, 0, 1, 1], [], []>} : vector<48x16xf32>, vector<16x32xf32>, vector<48x32xf32> -> vector<48x32xf32>
    %35 = arith.addf %25, %34 : vector<48x32xf32>
    %cst_31 = arith.constant dense<0.000000e+00> : vector<48x32xf32>
    %36 = tpu.matmul %33, %27, %cst_31 {dimension_numbers = #tpu.dot_dimension_numbers<[1], [0], [0], [1], [0, 0, 1, 1], [], []>} : vector<48x16xf32>, vector<16x32xf32>, vector<48x32xf32> -> vector<48x32xf32>
    %37 = arith.addf %26, %36 : vector<48x32xf32>
    %c32 = arith.constant 32 : index
    %c0_32 = arith.constant 0 : index
    %38 = vector.load %arg1[%c32, %c0_32] : memref<144x32xf32, #tpu.memory_space<vmem>>, vector<16x32xf32>
    %c1_33 = arith.constant 1 : index
    %c0_34 = arith.constant 0 : index
    %39 = tpu.strided_load %arg3[%c1_33, %c0_34] {strides = array<i32: 2, 1>} : memref<112x16xf32, #tpu.memory_space<vmem>>, vector<24x16xf32>
    %c57_35 = arith.constant 57 : index
    %c0_36 = arith.constant 0 : index
    %40 = tpu.strided_load %arg3[%c57_35, %c0_36] {strides = array<i32: 2, 1>} : memref<112x16xf32, #tpu.memory_space<vmem>>, vector<24x16xf32>
    %41 = tpu.concatenate %39, %40 in 0 : vector<24x16xf32>, vector<24x16xf32> -> vector<48x16xf32>
    %c2_37 = arith.constant 2 : index
    %c0_38 = arith.constant 0 : index
    %42 = tpu.strided_load %arg3[%c2_37, %c0_38] {strides = array<i32: 2, 1>} : memref<112x16xf32, #tpu.memory_space<vmem>>, vector<24x16xf32>
    %c58_39 = arith.constant 58 : index
    %c0_40 = arith.constant 0 : index
    %43 = tpu.strided_load %arg3[%c58_39, %c0_40] {strides = array<i32: 2, 1>} : memref<112x16xf32, #tpu.memory_space<vmem>>, vector<24x16xf32>
    %44 = tpu.concatenate %42, %43 in 0 : vector<24x16xf32>, vector<24x16xf32> -> vector<48x16xf32>
    %cst_41 = arith.constant dense<0.000000e+00> : vector<48x32xf32>
    %45 = tpu.matmul %41, %38, %cst_41 {dimension_numbers = #tpu.dot_dimension_numbers<[1], [0], [0], [1], [0, 0, 1, 1], [], []>} : vector<48x16xf32>, vector<16x32xf32>, vector<48x32xf32> -> vector<48x32xf32>
    %46 = arith.addf %35, %45 : vector<48x32xf32>
    %cst_42 = arith.constant dense<0.000000e+00> : vector<48x32xf32>
    %47 = tpu.matmul %44, %38, %cst_42 {dimension_numbers = #tpu.dot_dimension_numbers<[1], [0], [0], [1], [0, 0, 1, 1], [], []>} : vector<48x16xf32>, vector<16x32xf32>, vector<48x32xf32> -> vector<48x32xf32>
    %48 = arith.addf %37, %47 : vector<48x32xf32>
    %c48 = arith.constant 48 : index
    %c0_43 = arith.constant 0 : index
    %49 = vector.load %arg1[%c48, %c0_43] : memref<144x32xf32, #tpu.memory_space<vmem>>, vector<16x32xf32>
    %c2_44 = arith.constant 2 : index
    %c0_45 = arith.constant 0 : index
    %50 = tpu.strided_load %arg3[%c2_44, %c0_45] {strides = array<i32: 2, 1>} : memref<112x16xf32, #tpu.memory_space<vmem>>, vector<24x16xf32>
    %c58_46 = arith.constant 58 : index
    %c0_47 = arith.constant 0 : index
    %51 = tpu.strided_load %arg3[%c58_46, %c0_47] {strides = array<i32: 2, 1>} : memref<112x16xf32, #tpu.memory_space<vmem>>, vector<24x16xf32>
    %52 = tpu.concatenate %50, %51 in 0 : vector<24x16xf32>, vector<24x16xf32> -> vector<48x16xf32>
    %c3 = arith.constant 3 : index
    %c0_48 = arith.constant 0 : index
    %53 = tpu.strided_load %arg3[%c3, %c0_48] {strides = array<i32: 2, 1>} : memref<112x16xf32, #tpu.memory_space<vmem>>, vector<24x16xf32>
    %c59 = arith.constant 59 : index
    %c0_49 = arith.constant 0 : index
    %54 = tpu.strided_load %arg3[%c59, %c0_49] {strides = array<i32: 2, 1>} : memref<112x16xf32, #tpu.memory_space<vmem>>, vector<24x16xf32>
    %55 = tpu.concatenate %53, %54 in 0 : vector<24x16xf32>, vector<24x16xf32> -> vector<48x16xf32>
    %cst_50 = arith.constant dense<0.000000e+00> : vector<48x32xf32>
    %56 = tpu.matmul %52, %49, %cst_50 {dimension_numbers = #tpu.dot_dimension_numbers<[1], [0], [0], [1], [0, 0, 1, 1], [], []>} : vector<48x16xf32>, vector<16x32xf32>, vector<48x32xf32> -> vector<48x32xf32>
    %57 = arith.addf %46, %56 : vector<48x32xf32>
    %cst_51 = arith.constant dense<0.000000e+00> : vector<48x32xf32>
    %58 = tpu.matmul %55, %49, %cst_51 {dimension_numbers = #tpu.dot_dimension_numbers<[1], [0], [0], [1], [0, 0, 1, 1], [], []>} : vector<48x16xf32>, vector<16x32xf32>, vector<48x32xf32> -> vector<48x32xf32>
    %59 = arith.addf %48, %58 : vector<48x32xf32>
    %c64 = arith.constant 64 : index
    %c0_52 = arith.constant 0 : index
    %60 = vector.load %arg1[%c64, %c0_52] : memref<144x32xf32, #tpu.memory_space<vmem>>, vector<16x32xf32>
    %c3_53 = arith.constant 3 : index
    %c0_54 = arith.constant 0 : index
    %61 = tpu.strided_load %arg3[%c3_53, %c0_54] {strides = array<i32: 2, 1>} : memref<112x16xf32, #tpu.memory_space<vmem>>, vector<24x16xf32>
    %c59_55 = arith.constant 59 : index
    %c0_56 = arith.constant 0 : index
    %62 = tpu.strided_load %arg3[%c59_55, %c0_56] {strides = array<i32: 2, 1>} : memref<112x16xf32, #tpu.memory_space<vmem>>, vector<24x16xf32>
    %63 = tpu.concatenate %61, %62 in 0 : vector<24x16xf32>, vector<24x16xf32> -> vector<48x16xf32>
    %c4 = arith.constant 4 : index
    %c0_57 = arith.constant 0 : index
    %64 = tpu.strided_load %arg3[%c4, %c0_57] {strides = array<i32: 2, 1>} : memref<112x16xf32, #tpu.memory_space<vmem>>, vector<24x16xf32>
    %c60 = arith.constant 60 : index
    %c0_58 = arith.constant 0 : index
    %65 = tpu.strided_load %arg3[%c60, %c0_58] {strides = array<i32: 2, 1>} : memref<112x16xf32, #tpu.memory_space<vmem>>, vector<24x16xf32>
    %66 = tpu.concatenate %64, %65 in 0 : vector<24x16xf32>, vector<24x16xf32> -> vector<48x16xf32>
    %cst_59 = arith.constant dense<0.000000e+00> : vector<48x32xf32>
    %67 = tpu.matmul %63, %60, %cst_59 {dimension_numbers = #tpu.dot_dimension_numbers<[1], [0], [0], [1], [0, 0, 1, 1], [], []>} : vector<48x16xf32>, vector<16x32xf32>, vector<48x32xf32> -> vector<48x32xf32>
    %68 = arith.addf %57, %67 : vector<48x32xf32>
    %cst_60 = arith.constant dense<0.000000e+00> : vector<48x32xf32>
    %69 = tpu.matmul %66, %60, %cst_60 {dimension_numbers = #tpu.dot_dimension_numbers<[1], [0], [0], [1], [0, 0, 1, 1], [], []>} : vector<48x16xf32>, vector<16x32xf32>, vector<48x32xf32> -> vector<48x32xf32>
    %70 = arith.addf %59, %69 : vector<48x32xf32>
    %c80 = arith.constant 80 : index
    %c0_61 = arith.constant 0 : index
    %71 = vector.load %arg1[%c80, %c0_61] : memref<144x32xf32, #tpu.memory_space<vmem>>, vector<16x32xf32>
    %c4_62 = arith.constant 4 : index
    %c0_63 = arith.constant 0 : index
    %72 = tpu.strided_load %arg3[%c4_62, %c0_63] {strides = array<i32: 2, 1>} : memref<112x16xf32, #tpu.memory_space<vmem>>, vector<24x16xf32>
    %c60_64 = arith.constant 60 : index
    %c0_65 = arith.constant 0 : index
    %73 = tpu.strided_load %arg3[%c60_64, %c0_65] {strides = array<i32: 2, 1>} : memref<112x16xf32, #tpu.memory_space<vmem>>, vector<24x16xf32>
    %74 = tpu.concatenate %72, %73 in 0 : vector<24x16xf32>, vector<24x16xf32> -> vector<48x16xf32>
    %c5 = arith.constant 5 : index
    %c0_66 = arith.constant 0 : index
    %75 = tpu.strided_load %arg3[%c5, %c0_66] {strides = array<i32: 2, 1>} : memref<112x16xf32, #tpu.memory_space<vmem>>, vector<24x16xf32>
    %c61 = arith.constant 61 : index
    %c0_67 = arith.constant 0 : index
    %76 = tpu.strided_load %arg3[%c61, %c0_67] {strides = array<i32: 2, 1>} : memref<112x16xf32, #tpu.memory_space<vmem>>, vector<24x16xf32>
    %77 = tpu.concatenate %75, %76 in 0 : vector<24x16xf32>, vector<24x16xf32> -> vector<48x16xf32>
    %cst_68 = arith.constant dense<0.000000e+00> : vector<48x32xf32>
    %78 = tpu.matmul %74, %71, %cst_68 {dimension_numbers = #tpu.dot_dimension_numbers<[1], [0], [0], [1], [0, 0, 1, 1], [], []>} : vector<48x16xf32>, vector<16x32xf32>, vector<48x32xf32> -> vector<48x32xf32>
    %79 = arith.addf %68, %78 : vector<48x32xf32>
    %cst_69 = arith.constant dense<0.000000e+00> : vector<48x32xf32>
    %80 = tpu.matmul %77, %71, %cst_69 {dimension_numbers = #tpu.dot_dimension_numbers<[1], [0], [0], [1], [0, 0, 1, 1], [], []>} : vector<48x16xf32>, vector<16x32xf32>, vector<48x32xf32> -> vector<48x32xf32>
    %81 = arith.addf %70, %80 : vector<48x32xf32>
    %82 = arith.maximumf %79, %81 : vector<48x32xf32>
    %83 = vector.broadcast %2 : vector<1x32xf32> to vector<48x32xf32>
    %84 = arith.addf %82, %83 : vector<48x32xf32>
    %cst_70 = arith.constant 0.000000e+00 : f32
    %85 = vector.broadcast %cst_70 : f32 to vector<48x32xf32>
    %86 = arith.maximumf %84, %85 : vector<48x32xf32>
    %c96 = arith.constant 96 : index
    %c0_71 = arith.constant 0 : index
    %87 = vector.load %arg1[%c96, %c0_71] : memref<144x32xf32, #tpu.memory_space<vmem>>, vector<48x32xf32>
    %88 = vector.shape_cast %87 : vector<48x32xf32> to vector<2x24x32xf32>
    %89 = vector.shape_cast %86 : vector<48x32xf32> to vector<2x1x24x32xf32>
    %90 = vector.shape_cast %88 : vector<2x24x32xf32> to vector<1x2x24x32xf32>
    %91 = vector.broadcast %89 : vector<2x1x24x32xf32> to vector<2x2x24x32xf32>
    %92 = vector.broadcast %90 : vector<1x2x24x32xf32> to vector<2x2x24x32xf32>
    %93 = arith.mulf %91, %92 : vector<2x2x24x32xf32>
    %cst_72 = arith.constant dense<0.000000e+00> : vector<2x2x24xf32>
    %94 = vector.multi_reduction <add>, %93, %cst_72 [3] : vector<2x2x24x32xf32> to vector<2x2x24xf32>
    %cst_73 = arith.constant dense<0.000000e+00> : vector<2x2xf32>
    %95 = vector.multi_reduction <add>, %94, %cst_73 [2] : vector<2x2x24xf32> to vector<2x2xf32>
    %96 = vector.broadcast %3 : vector<1x2xf32> to vector<2x2xf32>
    %97 = arith.addf %95, %96 : vector<2x2xf32>
    %c0_74 = arith.constant 0 : index
    %c0_75 = arith.constant 0 : index
    %98 = vector.load %arg2[%c0_74, %c0_75] : memref<2x2xf32, #tpu.memory_space<vmem>>, vector<2x2xf32>
    tpu.vector_store %arg2[%c0_74, %c0_75], %97 {strides = array<i32>} : memref<2x2xf32, #tpu.memory_space<vmem>>, vector<2x2xf32>,
    return
  }
}

</mosaic_0001>

<llo_original>
// kernel: cnn_forward.1
$region0: #{cnn_forward.1}
  #allocation0 [shape = 'u32[]', space=smem, size = 0x4, offset = 0x4, fixed_abs, tag = 'smem constant byte address 0x4 - core index']
  #allocation1 [shape = 'u32[144,128]{1,0:T(1,128)}', space=vmem, size = 0x12000, scoped, tag = 'internal scratch']
  #allocation2 [shape = 'f32[112,16]{1,0:T(8,128)}', space=vmem, size = 0xe000, scoped, tag = 'scratch operand']
  %s0 = inlined_call_operand.vmem [shape: f32[192,8], index: 0, kind: input, shape index: {}]
  %s1 = inlined_call_operand.vmem [shape: f32[144,32], index: 1, kind: input, shape index: {}]
  %s2 = inlined_call_operand.hbm [shape: f32[2,2], index: 2, kind: output, shape index: {}]
  %s3 = sld [smem:[#allocation0]]
  $region18: #{cnn_forward.1} parent=0
    _
  %s5 = ssub.s32 1, %s3
  %s6 = scalar_select 0, %s5, %s3
  $region1: #{cnn_forward.1} parent=0
    #allocation3 [shape = 'u8[1024]{0}', space=vmem, size = 0x400, scoped, tag = 'output window, operand 0, single buffered']
    #allocation4 [shape = 's32[1]{0}', space=sflag, size = 0x4, scoped, tag = 'scoped memory for cnn_forward.1']
    %7 = vsyncpa [#allocation4], 0
    // Predicated region
    $region2: #{cnn_forward.1} parent=1 // pred_check
      _
    $region3: #{cnn_forward.1} parent=1 // pred_check_branch
      %9 = sbr.rel (0) target = $region5
    $region4: #{cnn_forward.1} parent=1 // pred_region
      _
    $region5: #{cnn_forward.1} parent=1 // pred_fallthru
      _
    // Predicated region
    $region6: #{cnn_forward.1} parent=1 // pred_check
      _
    $region7: #{cnn_forward.1} parent=1 // pred_check_branch
      %11 = sbr.rel (0) target = $region9
    $region8: #{cnn_forward.1} parent=1 // pred_region
      _
    $region9: #{cnn_forward.1} parent=1 // pred_fallthru
      _
    %v12 = vld [vmem:[%s1] sm:$0xff]
    %v13 = vld [vmem:[%s1 + $0x8] sm:$0x1]
    %v14 = vld [vmem:[%s1 + $0x9] sm:$0x1]
    %v15 = vld [vmem:[%s1 + $0xa] sm:$0x1]
    %v16 = vld [vmem:[%s0] ss:$2 sm:$0xff]
    %s17 = scalar_lea.vmem %s0, 16
    %v18 = vld [vmem:[%s17] ss:$2 sm:$0xff]
    %s19 = scalar_lea.vmem %s0, 32
    %v20 = vld [vmem:[%s19] ss:$2 sm:$0xff]
    %s21 = scalar_lea.vmem %s0, 48
    %v22 = vld [vmem:[%s21] ss:$2 sm:$0xff]
    %s23 = scalar_lea.vmem %s0, 64
    %v24 = vld [vmem:[%s23] ss:$2 sm:$0xff]
    %s25 = scalar_lea.vmem %s0, 80
    %v26 = vld [vmem:[%s25] ss:$2 sm:$0xff]
    %s27 = scalar_lea.vmem %s0, 96
    %v28 = vld [vmem:[%s27] ss:$2 sm:$0xff]
    %s29 = scalar_lea.vmem %s0, 112
    %v30 = vld [vmem:[%s29] ss:$2 sm:$0xff]
    %s31 = scalar_lea.vmem %s0, 128
    %v32 = vld [vmem:[%s31] ss:$2 sm:$0xff]
    %s33 = scalar_lea.vmem %s0, 144
    %v34 = vld [vmem:[%s33] ss:$2 sm:$0xff]
    %s35 = scalar_lea.vmem %s0, 160
    %v36 = vld [vmem:[%s35] ss:$2 sm:$0xff]
    %s37 = scalar_lea.vmem %s0, 176
    %v38 = vld [vmem:[%s37] ss:$2 sm:$0xff]
    %vm39 = vcmask 64512
    %v41 = vsel %vm39, %v16, 0
    %v44 = vsel %vm39, %v18, 0
    %v47 = vsel %vm39, %v20, 0
    %v50 = vsel %vm39, %v22, 0
    %v53 = vsel %vm39, %v24, 0
    %v56 = vsel %vm39, %v26, 0
    %v59 = vsel %vm39, %v28, 0
    %v62 = vsel %vm39, %v30, 0
    %v65 = vsel %vm39, %v32, 0
    %v68 = vsel %vm39, %v34, 0
    %v71 = vsel %vm39, %v36, 0
    %v74 = vsel %vm39, %v38, 0
    %76 = vmatprep.subr.mxu0 0.0
    %77 = vmatpush1.msra.mxu0 %v12
    %78 = vmatprep.subr.mxu0 0.0
    %79 = vmatpush1.msra.mxu0 0.0
    %80 = vmatprep.subr.mxu0 0.0
    %81 = vmatpush1.msra.mxu0 0.0
    %82 = vmatprep.subr.mxu0 0.0
    %83 = vmatpush1.msra.mxu0 0.0
    %84 = vmatprep.subr.mxu0 0.0
    %85 = vmatpush1.msra.mxu0 0.0
    %86 = vmatprep.subr.mxu0 0.0
    %87 = vmatpush1.msra.mxu0 0.0
    %88 = vmatprep.subr.mxu0 0.0
    %89 = vmatpush1.msra.mxu0 0.0
    %90 = vmatprep.subr.mxu0 0.0
    %91 = vmatpush1.msra.mxu0 0.0
    %92 = vmatprep.subr.mxu0 0.0
    %93 = vmatpush1.msra.mxu0 0.0
    %94 = vmatprep.subr.mxu0 0.0
    %95 = vmatpush1.msra.mxu0 0.0
    %96 = vmatprep.subr.mxu0 0.0
    %97 = vmatpush1.msra.mxu0 0.0
    %98 = vmatprep.subr.mxu0 0.0
    %99 = vmatpush1.msra.mxu0 0.0
    %100 = vmatprep.subr.mxu0 0.0
    %101 = vmatpush1.msra.mxu0 0.0
    %102 = vmatprep.subr.mxu0 0.0
    %103 = vmatpush1.msra.mxu0 0.0
    %104 = vmatprep.subr.mxu0 0.0
    %105 = vmatpush1.msra.mxu0 0.0
    %106 = vmatprep.subr.mxu0 0.0
    %107 = vmatpush1.msra.mxu0 0.0
    %108 = vmatprep.subr.mxu0 0.0
    %109 = vmatpush1.msra.mxu0 0.0
    %110 = vmatprep.subr.mxu0 0.0
    %111 = vmatpush1.msra.mxu0 0.0
    %112 = vmatprep.subr.mxu0 0.0
    %113 = vmatpush1.msra.mxu0 0.0
    %114 = vmatprep.subr.mxu0 0.0
    %115 = vmatpush1.msra.mxu0 0.0
    %116 = vmatprep.subr.mxu0 0.0
    %117 = vmatpush1.msra.mxu0 0.0
    %118 = vmatprep.subr.mxu0 0.0
    %119 = vmatpush1.msra.mxu0 0.0
    %120 = vmatprep.subr.mxu0 0.0
    %121 = vmatpush1.msra.mxu0 0.0
    %122 = vmatprep.subr.mxu0 0.0
    %123 = vmatpush1.msra.mxu0 0.0
    %124 = vmatprep.subr.mxu0 0.0
    %125 = vmatpush1.msra.mxu0 0.0
    %126 = vmatprep.subr.mxu0 0.0
    %127 = vmatpush1.msra.mxu0 0.0
    %128 = vmatprep.subr.mxu0 0.0
    %129 = vmatpush1.msra.mxu0 0.0
    %130 = vmatprep.subr.mxu0 0.0
    %131 = vmatpush1.msra.mxu0 0.0
    %132 = vmatprep.subr.mxu0 0.0
    %133 = vmatpush1.msra.mxu0 0.0
    %134 = vmatprep.subr.mxu0 0.0
    %135 = vmatpush1.msra.mxu0 0.0
    %136 = vmatprep.subr.mxu0 0.0
    %137 = vmatpush1.msra.mxu0 0.0
    %138 = vmatprep.subr.mxu0 0.0
    %139 = vmatpush1.msra.mxu0 0.0
    %140 = vmatprep.mubr.f32.mxu0 0.0
    %141 = vmatmul.mubr.f32.gmra.mrb[0].mxu0 %v41
    %v142 = vpop.f32.mrb[0].mxu0
    %v143 = vadd.f32 0.0, %v142
    %v144 = vpop.f32.mrb[0].mxu0
    %145 = vmatprep.mubr.f32.mxu0 0.0
    %146 = vmatmul.mubr.f32.gmra.mrb[0].mxu0 %v44
    %v147 = vpop.f32.mrb[0].mxu0
    %v148 = vadd.f32 0.0, %v147
    %v149 = vpop.f32.mrb[0].mxu0
    %150 = vmatprep.mubr.f32.mxu0 0.0
    %151 = vmatmul.mubr.f32.gmra.mrb[0].mxu0 %v47
    %v152 = vpop.f32.mrb[0].mxu0
    %v153 = vadd.f32 0.0, %v152
    %v154 = vpop.f32.mrb[0].mxu0
    %155 = vmatprep.mubr.f32.mxu0 0.0
    %156 = vmatmul.mubr.f32.gmra.mrb[0].mxu0 %v50
    %v157 = vpop.f32.mrb[0].mxu0
    %v158 = vadd.f32 0.0, %v157
    %v159 = vpop.f32.mrb[0].mxu0
    %160 = vmatprep.mubr.f32.mxu0 0.0
    %161 = vmatmul.mubr.f32.gmra.mrb[0].mxu0 %v53
    %v162 = vpop.f32.mrb[0].mxu0
    %v163 = vadd.f32 0.0, %v162
    %v164 = vpop.f32.mrb[0].mxu0
    %165 = vmatprep.mubr.f32.mxu0 0.0
    %166 = vmatmul.mubr.f32.gmra.mrb[0].mxu0 %v56
    %v167 = vpop.f32.mrb[0].mxu0
    %v168 = vadd.f32 0.0, %v167
    %v169 = vpop.f32.mrb[0].mxu0
    %170 = vmatprep.mubr.f32.mxu0 0.0
    %171 = vmatmul.mubr.f32.gmra.mrb[0].mxu0 %v59
    %v172 = vpop.f32.mrb[0].mxu0
    %v173 = vadd.f32 0.0, %v172
    %v174 = vpop.f32.mrb[0].mxu0
    %175 = vmatprep.mubr.f32.mxu0 0.0
    %176 = vmatmul.mubr.f32.gmra.mrb[0].mxu0 %v62
    %v177 = vpop.f32.mrb[0].mxu0
    %v178 = vadd.f32 0.0, %v177
    %v179 = vpop.f32.mrb[0].mxu0
    %180 = vmatprep.mubr.f32.mxu0 0.0
    %181 = vmatmul.mubr.f32.gmra.mrb[0].mxu0 %v65
    %v182 = vpop.f32.mrb[0].mxu0
    %v183 = vadd.f32 0.0, %v182
    %v184 = vpop.f32.mrb[0].mxu0
    %185 = vmatprep.mubr.f32.mxu0 0.0
    %186 = vmatmul.mubr.f32.gmra.mrb[0].mxu0 %v68
    %v187 = vpop.f32.mrb[0].mxu0
    %v188 = vadd.f32 0.0, %v187
    %v189 = vpop.f32.mrb[0].mxu0
    %190 = vmatprep.mubr.f32.mxu0 0.0
    %191 = vmatmul.mubr.f32.gmra.mrb[0].mxu0 %v71
    %v192 = vpop.f32.mrb[0].mxu0
    %v193 = vadd.f32 0.0, %v192
    %v194 = vpop.f32.mrb[0].mxu0
    %195 = vmatprep.mubr.f32.mxu0 0.0
    %196 = vmatmul.mubr.f32.gmra.mrb[0].mxu0 %v74
    %v197 = vpop.f32.mrb[0].mxu0
    %v198 = vadd.f32 0.0, %v197
    %v199 = vpop.f32.mrb[0].mxu0
    %200 = vdwg.mxu0
    %s201 = scalar_lea.vmem %s0, 1
    %v202 = vld [vmem:[%s201] ss:$2 sm:$0xff]
    %s203 = scalar_lea.vmem %s0, 17
    %v204 = vld [vmem:[%s203] ss:$2 sm:$0xff]
    %s205 = scalar_lea.vmem %s0, 33
    %v206 = vld [vmem:[%s205] ss:$2 sm:$0xff]
    %s207 = scalar_lea.vmem %s0, 49
    %v208 = vld [vmem:[%s207] ss:$2 sm:$0xff]
    %s209 = scalar_lea.vmem %s0, 65
    %v210 = vld [vmem:[%s209] ss:$2 sm:$0xff]
    %s211 = scalar_lea.vmem %s0, 81
    %v212 = vld [vmem:[%s211] ss:$2 sm:$0xff]
    %s213 = scalar_lea.vmem %s0, 97
    %v214 = vld [vmem:[%s213] ss:$2 sm:$0xff]
    %s215 = scalar_lea.vmem %s0, 113
    %v216 = vld [vmem:[%s215] ss:$2 sm:$0xff]
    %s217 = scalar_lea.vmem %s0, 129
    %v218 = vld [vmem:[%s217] ss:$2 sm:$0xff]
    %s219 = scalar_lea.vmem %s0, 145
    %v220 = vld [vmem:[%s219] ss:$2 sm:$0xff]
    %s221 = scalar_lea.vmem %s0, 161
    %v222 = vld [vmem:[%s221] ss:$2 sm:$0xff]
    %s223 = scalar_lea.vmem %s0, 177
    %v224 = vld [vmem:[%s223] ss:$2 sm:$0xff]
    %v226 = vsel %vm39, %v202, 0
    %v229 = vsel %vm39, %v204, 0
    %v232 = vsel %vm39, %v206, 0
    %v235 = vsel %vm39, %v208, 0
    %v238 = vsel %vm39, %v210, 0
    %v241 = vsel %vm39, %v212, 0
    %v244 = vsel %vm39, %v214, 0
    %v247 = vsel %vm39, %v216, 0
    %v250 = vsel %vm39, %v218, 0
    %v253 = vsel %vm39, %v220, 0
    %v256 = vsel %vm39, %v222, 0
    %v259 = vsel %vm39, %v224, 0
    %261 = vmatprep.subr.mxu0 0.0
    %262 = vmatpush1.msra.mxu0 %v12
    %263 = vmatprep.subr.mxu0 0.0
    %264 = vmatpush1.msra.mxu0 0.0
    %265 = vmatprep.subr.mxu0 0.0
    %266 = vmatpush1.msra.mxu0 0.0
    %267 = vmatprep.subr.mxu0 0.0
    %268 = vmatpush1.msra.mxu0 0.0
    %269 = vmatprep.subr.mxu0 0.0
    %270 = vmatpush1.msra.mxu0 0.0
    %271 = vmatprep.subr.mxu0 0.0
    %272 = vmatpush1.msra.mxu0 0.0
    %273 = vmatprep.subr.mxu0 0.0
    %274 = vmatpush1.msra.mxu0 0.0
    %275 = vmatprep.subr.mxu0 0.0
    %276 = vmatpush1.msra.mxu0 0.0
    %277 = vmatprep.subr.mxu0 0.0
    %278 = vmatpush1.msra.mxu0 0.0
    %279 = vmatprep.subr.mxu0 0.0
    %280 = vmatpush1.msra.mxu0 0.0
    %281 = vmatprep.subr.mxu0 0.0
    %282 = vmatpush1.msra.mxu0 0.0
    %283 = vmatprep.subr.mxu0 0.0
    %284 = vmatpush1.msra.mxu0 0.0
    %285 = vmatprep.subr.mxu0 0.0
    %286 = vmatpush1.msra.mxu0 0.0
    %287 = vmatprep.subr.mxu0 0.0
    %288 = vmatpush1.msra.mxu0 0.0
    %289 = vmatprep.subr.mxu0 0.0
    %290 = vmatpush1.msra.mxu0 0.0
    %291 = vmatprep.subr.mxu0 0.0
    %292 = vmatpush1.msra.mxu0 0.0
    %293 = vmatprep.subr.mxu0 0.0
    %294 = vmatpush1.msra.mxu0 0.0
    %295 = vmatprep.subr.mxu0 0.0
    %296 = vmatpush1.msra.mxu0 0.0
    %297 = vmatprep.subr.mxu0 0.0
    %298 = vmatpush1.msra.mxu0 0.0
    %299 = vmatprep.subr.mxu0 0.0
    %300 = vmatpush1.msra.mxu0 0.0
    %301 = vmatprep.subr.mxu0 0.0
    %302 = vmatpush1.msra.mxu0 0.0
    %303 = vmatprep.subr.mxu0 0.0
    %304 = vmatpush1.msra.mxu0 0.0
    %305 = vmatprep.subr.mxu0 0.0
    %306 = vmatpush1.msra.mxu0 0.0
    %307 = vmatprep.subr.mxu0 0.0
    %308 = vmatpush1.msra.mxu0 0.0
    %309 = vmatprep.subr.mxu0 0.0
    %310 = vmatpush1.msra.mxu0 0.0
    %311 = vmatprep.subr.mxu0 0.0
    %312 = vmatpush1.msra.mxu0 0.0
    %313 = vmatprep.subr.mxu0 0.0
    %314 = vmatpush1.msra.mxu0 0.0
    %315 = vmatprep.subr.mxu0 0.0
    %316 = vmatpush1.msra.mxu0 0.0
    %317 = vmatprep.subr.mxu0 0.0
    %318 = vmatpush1.msra.mxu0 0.0
    %319 = vmatprep.subr.mxu0 0.0
    %320 = vmatpush1.msra.mxu0 0.0
    %321 = vmatprep.subr.mxu0 0.0
    %322 = vmatpush1.msra.mxu0 0.0
    %323 = vmatprep.subr.mxu0 0.0
    %324 = vmatpush1.msra.mxu0 0.0
    %325 = vmatprep.mubr.f32.mxu0 0.0
    %326 = vmatmul.mubr.f32.gmra.mrb[0].mxu0 %v226
    %v327 = vpop.f32.mrb[0].mxu0
    %v328 = vadd.f32 0.0, %v327
    %v329 = vpop.f32.mrb[0].mxu0
    %330 = vmatprep.mubr.f32.mxu0 0.0
    %331 = vmatmul.mubr.f32.gmra.mrb[0].mxu0 %v229
    %v332 = vpop.f32.mrb[0].mxu0
    %v333 = vadd.f32 0.0, %v332
    %v334 = vpop.f32.mrb[0].mxu0
    %335 = vmatprep.mubr.f32.mxu0 0.0
    %336 = vmatmul.mubr.f32.gmra.mrb[0].mxu0 %v232
    %v337 = vpop.f32.mrb[0].mxu0
    %v338 = vadd.f32 0.0, %v337
    %v339 = vpop.f32.mrb[0].mxu0
    %340 = vmatprep.mubr.f32.mxu0 0.0
    %341 = vmatmul.mubr.f32.gmra.mrb[0].mxu0 %v235
    %v342 = vpop.f32.mrb[0].mxu0
    %v343 = vadd.f32 0.0, %v342
    %v344 = vpop.f32.mrb[0].mxu0
    %345 = vmatprep.mubr.f32.mxu0 0.0
    %346 = vmatmul.mubr.f32.gmra.mrb[0].mxu0 %v238
    %v347 = vpop.f32.mrb[0].mxu0
    %v348 = vadd.f32 0.0, %v347
    %v349 = vpop.f32.mrb[0].mxu0
    %350 = vmatprep.mubr.f32.mxu0 0.0
    %351 = vmatmul.mubr.f32.gmra.mrb[0].mxu0 %v241
    %v352 = vpop.f32.mrb[0].mxu0
    %v353 = vadd.f32 0.0, %v352
    %v354 = vpop.f32.mrb[0].mxu0
    %355 = vmatprep.mubr.f32.mxu0 0.0
    %356 = vmatmul.mubr.f32.gmra.mrb[0].mxu0 %v244
    %v357 = vpop.f32.mrb[0].mxu0
    %v358 = vadd.f32 0.0, %v357
    %v359 = vpop.f32.mrb[0].mxu0
    %360 = vmatprep.mubr.f32.mxu0 0.0
    %361 = vmatmul.mubr.f32.gmra.mrb[0].mxu0 %v247
    %v362 = vpop.f32.mrb[0].mxu0
    %v363 = vadd.f32 0.0, %v362
    %v364 = vpop.f32.mrb[0].mxu0
    %365 = vmatprep.mubr.f32.mxu0 0.0
    %366 = vmatmul.mubr.f32.gmra.mrb[0].mxu0 %v250
    %v367 = vpop.f32.mrb[0].mxu0
    %v368 = vadd.f32 0.0, %v367
    %v369 = vpop.f32.mrb[0].mxu0
    %370 = vmatprep.mubr.f32.mxu0 0.0
    %371 = vmatmul.mubr.f32.gmra.mrb[0].mxu0 %v253
    %v372 = vpop.f32.mrb[0].mxu0
    %v373 = vadd.f32 0.0, %v372
    %v374 = vpop.f32.mrb[0].mxu0
    %375 = vmatprep.mubr.f32.mxu0 0.0
    %376 = vmatmul.mubr.f32.gmra.mrb[0].mxu0 %v256
    %v377 = vpop.f32.mrb[0].mxu0
    %v378 = vadd.f32 0.0, %v377
    %v379 = vpop.f32.mrb[0].mxu0
    %380 = vmatprep.mubr.f32.mxu0 0.0
    %381 = vmatmul.mubr.f32.gmra.mrb[0].mxu0 %v259
    %v382 = vpop.f32.mrb[0].mxu0
    %v383 = vadd.f32 0.0, %v382
    %v384 = vpop.f32.mrb[0].mxu0
    %385 = vdwg.mxu0
    %v386 = vmax.f32 %v143, %v328
    %v387 = vmax.f32 %v148, %v333
    %v388 = vmax.f32 %v153, %v338
    %v389 = vmax.f32 %v158, %v343
    %v390 = vmax.f32 %v163, %v348
    %v391 = vmax.f32 %v168, %v353
    %v392 = vmax.f32 %v173, %v358
    %v393 = vmax.f32 %v178, %v363
    %v394 = vmax.f32 %v183, %v368
    %v395 = vmax.f32 %v188, %v373
    %v396 = vmax.f32 %v193, %v378
    %v397 = vmax.f32 %v198, %v383
    %v398 = vlaneseq
    %v399 = vshrl.u32 %v398, 7
    %v400 = vsub.s32 0, %v399
    %v401 = vrot.slane %v13, %v400
    %v402 = vadd.f32 %v386, %v401
    %v403 = vadd.f32 %v387, %v401
    %v404 = vadd.f32 %v388, %v401
    %v405 = vadd.f32 %v389, %v401
    %v406 = vadd.f32 %v390, %v401
    %v407 = vadd.f32 %v391, %v401
    %v408 = vadd.f32 %v392, %v401
    %v409 = vadd.f32 %v393, %v401
    %v410 = vadd.f32 %v394, %v401
    %v411 = vadd.f32 %v395, %v401
    %v412 = vadd.f32 %v396, %v401
    %v413 = vadd.f32 %v397, %v401
    %v414 = vmax.f32 %v402, 0.0
    %v415 = vmax.f32 %v403, 0.0
    %v416 = vmax.f32 %v404, 0.0
    %v417 = vmax.f32 %v405, 0.0
    %v418 = vmax.f32 %v406, 0.0
    %v419 = vmax.f32 %v407, 0.0
    %v420 = vmax.f32 %v408, 0.0
    %v421 = vmax.f32 %v409, 0.0
    %v422 = vmax.f32 %v410, 0.0
    %v423 = vmax.f32 %v411, 0.0
    %v424 = vmax.f32 %v412, 0.0
    %v425 = vmax.f32 %v413, 0.0
    %vm426 = vcmask 123904
    %427 = vst.msk [vmem:[#allocation2] sm:$0x3] %vm426, 0.0
    %428 = vst.msk [vmem:[#allocation2 + $0x32] sm:$0x3] %vm426, 0.0
    %vm429 = vcmask 130048
    %430 = vst.msk [vmem:[#allocation2 + $0x2] sm:$0xff] %vm429, %v414
    %431 = vst.msk [vmem:[#allocation2 + $0xa] sm:$0xff] %vm429, %v415
    %432 = vst.msk [vmem:[#allocation2 + $0x12] sm:$0xff] %vm429, %v416
    %433 = vst.msk [vmem:[#allocation2 + $0x1a] sm:$0xff] %vm429, %v417
    %434 = vst.msk [vmem:[#allocation2 + $0x22] sm:$0xff] %vm429, %v418
    %435 = vst.msk [vmem:[#allocation2 + $0x2a] sm:$0xff] %vm429, %v419
    %436 = vst.msk [vmem:[#allocation2 + $0x38] sm:$0x3] %vm426, 0.0
    %437 = vst.msk [vmem:[#allocation2 + $0x6a] sm:$0x3] %vm426, 0.0
    %438 = vst.msk [vmem:[#allocation2 + $0x3a] sm:$0xff] %vm429, %v420
    %439 = vst.msk [vmem:[#allocation2 + $0x42] sm:$0xff] %vm429, %v421
    %440 = vst.msk [vmem:[#allocation2 + $0x4a] sm:$0xff] %vm429, %v422
    %441 = vst.msk [vmem:[#allocation2 + $0x52] sm:$0xff] %vm429, %v423
    %442 = vst.msk [vmem:[#allocation2 + $0x5a] sm:$0xff] %vm429, %v424
    %443 = vst.msk [vmem:[#allocation2 + $0x62] sm:$0xff] %vm429, %v425
    %v444 = vld [vmem:[%s1 + $0x10] sm:$0xff]
    %v445 = vld [vmem:[%s1 + $0x18] sm:$0xff]
    %v446 = vld [vmem:[#allocation2] ss:$2 sm:$0xff]
    %s447 = scalar_lea.vmem [#allocation2], 16
    %v448 = vld [vmem:[%s447] ss:$2 sm:$0xff]
    %s449 = scalar_lea.vmem [#allocation2], 32
    %v450 = vld [vmem:[%s449] ss:$2 sm:$0xff]
    %s451 = scalar_lea.vmem [#allocation2], 56
    %v452 = vld [vmem:[%s451] ss:$2 sm:$0xff]
    %s453 = scalar_lea.vmem [#allocation2], 72
    %v454 = vld [vmem:[%s453] ss:$2 sm:$0xff]
    %s455 = scalar_lea.vmem [#allocation2], 88
    %v456 = vld [vmem:[%s455] ss:$2 sm:$0xff]
    %s457 = scalar_lea.vmem [#allocation2], 1
    %v458 = vld [vmem:[%s457] ss:$2 sm:$0xff]
    %s459 = scalar_lea.vmem [#allocation2], 17
    %v460 = vld [vmem:[%s459] ss:$2 sm:$0xff]
    %s461 = scalar_lea.vmem [#allocation2], 33
    %v462 = vld [vmem:[%s461] ss:$2 sm:$0xff]
    %s463 = scalar_lea.vmem [#allocation2], 57
    %v464 = vld [vmem:[%s463] ss:$2 sm:$0xff]
    %s465 = scalar_lea.vmem [#allocation2], 73
    %v466 = vld [vmem:[%s465] ss:$2 sm:$0xff]
    %s467 = scalar_lea.vmem [#allocation2], 89
    %v468 = vld [vmem:[%s467] ss:$2 sm:$0xff]
    %v469 = vld [vmem:[%s1 + $0x20] sm:$0xff]
    %v470 = vld [vmem:[%s1 + $0x28] sm:$0xff]
    %s471 = scalar_lea.vmem [#allocation2], 2
    %v472 = vld [vmem:[%s471] ss:$2 sm:$0xff]
    %s473 = scalar_lea.vmem [#allocation2], 18
    %v474 = vld [vmem:[%s473] ss:$2 sm:$0xff]
    %s475 = scalar_lea.vmem [#allocation2], 34
    %v476 = vld [vmem:[%s475] ss:$2 sm:$0xff]
    %s477 = scalar_lea.vmem [#allocation2], 58
    %v478 = vld [vmem:[%s477] ss:$2 sm:$0xff]
    %s479 = scalar_lea.vmem [#allocation2], 74
    %v480 = vld [vmem:[%s479] ss:$2 sm:$0xff]
    %s481 = scalar_lea.vmem [#allocation2], 90
    %v482 = vld [vmem:[%s481] ss:$2 sm:$0xff]
    %v484 = vsel %vm429, %v458, 0
    %v487 = vsel %vm429, %v460, 0
    %v490 = vsel %vm429, %v462, 0
    %v493 = vsel %vm429, %v464, 0
    %v496 = vsel %vm429, %v466, 0
    %v499 = vsel %vm429, %v468, 0
    %501 = vmatprep.subr.mxu0 0.0
    %502 = vmatpush1.msra.mxu0 %v469
    %503 = vmatprep.subr.mxu0 0.0
    %504 = vmatpush1.msra.mxu0 %v470
    %505 = vmatprep.subr.mxu0 0.0
    %506 = vmatpush1.msra.mxu0 0.0
    %507 = vmatprep.subr.mxu0 0.0
    %508 = vmatpush1.msra.mxu0 0.0
    %509 = vmatprep.subr.mxu0 0.0
    %510 = vmatpush1.msra.mxu0 0.0
    %511 = vmatprep.subr.mxu0 0.0
    %512 = vmatpush1.msra.mxu0 0.0
    %513 = vmatprep.subr.mxu0 0.0
    %514 = vmatpush1.msra.mxu0 0.0
    %515 = vmatprep.subr.mxu0 0.0
    %516 = vmatpush1.msra.mxu0 0.0
    %517 = vmatprep.subr.mxu0 0.0
    %518 = vmatpush1.msra.mxu0 0.0
    %519 = vmatprep.subr.mxu0 0.0
    %520 = vmatpush1.msra.mxu0 0.0
    %521 = vmatprep.subr.mxu0 0.0
    %522 = vmatpush1.msra.mxu0 0.0
    %523 = vmatprep.subr.mxu0 0.0
    %524 = vmatpush1.msra.mxu0 0.0
    %525 = vmatprep.subr.mxu0 0.0
    %526 = vmatpush1.msra.mxu0 0.0
    %527 = vmatprep.subr.mxu0 0.0
    %528 = vmatpush1.msra.mxu0 0.0
    %529 = vmatprep.subr.mxu0 0.0
    %530 = vmatpush1.msra.mxu0 0.0
    %531 = vmatprep.subr.mxu0 0.0
    %532 = vmatpush1.msra.mxu0 0.0
    %533 = vmatprep.subr.mxu0 0.0
    %534 = vmatpush1.msra.mxu0 0.0
    %535 = vmatprep.subr.mxu0 0.0
    %536 = vmatpush1.msra.mxu0 0.0
    %537 = vmatprep.subr.mxu0 0.0
    %538 = vmatpush1.msra.mxu0 0.0
    %539 = vmatprep.subr.mxu0 0.0
    %540 = vmatpush1.msra.mxu0 0.0
    %541 = vmatprep.subr.mxu0 0.0
    %542 = vmatpush1.msra.mxu0 0.0
    %543 = vmatprep.subr.mxu0 0.0
    %544 = vmatpush1.msra.mxu0 0.0
    %545 = vmatprep.subr.mxu0 0.0
    %546 = vmatpush1.msra.mxu0 0.0
    %547 = vmatprep.subr.mxu0 0.0
    %548 = vmatpush1.msra.mxu0 0.0
    %549 = vmatprep.subr.mxu0 0.0
    %550 = vmatpush1.msra.mxu0 0.0
    %551 = vmatprep.subr.mxu0 0.0
    %552 = vmatpush1.msra.mxu0 0.0
    %553 = vmatprep.subr.mxu0 0.0
    %554 = vmatpush1.msra.mxu0 0.0
    %555 = vmatprep.subr.mxu0 0.0
    %556 = vmatpush1.msra.mxu0 0.0
    %557 = vmatprep.subr.mxu0 0.0
    %558 = vmatpush1.msra.mxu0 0.0
    %559 = vmatprep.subr.mxu0 0.0
    %560 = vmatpush1.msra.mxu0 0.0
    %561 = vmatprep.subr.mxu0 0.0
    %562 = vmatpush1.msra.mxu0 0.0
    %563 = vmatprep.subr.mxu0 0.0
    %564 = vmatpush1.msra.mxu0 0.0
    %565 = vmatprep.mubr.f32.mxu0 0.0
    %566 = vmatmul.mubr.f32.gmra.mrb[0].mxu0 %v484
    %v567 = vpop.f32.mrb[0].mxu0
    %v568 = vadd.f32 0.0, %v567
    %v569 = vpop.f32.mrb[0].mxu0
    %570 = vmatprep.mubr.f32.mxu0 0.0
    %571 = vmatmul.mubr.f32.gmra.mrb[0].mxu0 %v487
    %v572 = vpop.f32.mrb[0].mxu0
    %v573 = vadd.f32 0.0, %v572
    %v574 = vpop.f32.mrb[0].mxu0
    %575 = vmatprep.mubr.f32.mxu0 0.0
    %576 = vmatmul.mubr.f32.gmra.mrb[0].mxu0 %v490
    %v577 = vpop.f32.mrb[0].mxu0
    %v578 = vadd.f32 0.0, %v577
    %v579 = vpop.f32.mrb[0].mxu0
    %580 = vmatprep.mubr.f32.mxu0 0.0
    %581 = vmatmul.mubr.f32.gmra.mrb[0].mxu0 %v493
    %v582 = vpop.f32.mrb[0].mxu0
    %v583 = vadd.f32 0.0, %v582
    %v584 = vpop.f32.mrb[0].mxu0
    %585 = vmatprep.mubr.f32.mxu0 0.0
    %586 = vmatmul.mubr.f32.gmra.mrb[0].mxu0 %v496
    %v587 = vpop.f32.mrb[0].mxu0
    %v588 = vadd.f32 0.0, %v587
    %v589 = vpop.f32.mrb[0].mxu0
    %590 = vmatprep.mubr.f32.mxu0 0.0
    %591 = vmatmul.mubr.f32.gmra.mrb[0].mxu0 %v499
    %v592 = vpop.f32.mrb[0].mxu0
    %v593 = vadd.f32 0.0, %v592
    %v594 = vpop.f32.mrb[0].mxu0
    %595 = vdwg.mxu0
    %v597 = vsel %vm429, %v446, 0
    %v600 = vsel %vm429, %v448, 0
    %v603 = vsel %vm429, %v450, 0
    %v606 = vsel %vm429, %v452, 0
    %v609 = vsel %vm429, %v454, 0
    %v612 = vsel %vm429, %v456, 0
    %614 = vmatprep.subr.mxu0 0.0
    %615 = vmatpush1.msra.mxu0 %v444
    %616 = vmatprep.subr.mxu0 0.0
    %617 = vmatpush1.msra.mxu0 %v445
    %618 = vmatprep.subr.mxu0 0.0
    %619 = vmatpush1.msra.mxu0 0.0
    %620 = vmatprep.subr.mxu0 0.0
    %621 = vmatpush1.msra.mxu0 0.0
    %622 = vmatprep.subr.mxu0 0.0
    %623 = vmatpush1.msra.mxu0 0.0
    %624 = vmatprep.subr.mxu0 0.0
    %625 = vmatpush1.msra.mxu0 0.0
    %626 = vmatprep.subr.mxu0 0.0
    %627 = vmatpush1.msra.mxu0 0.0
    %628 = vmatprep.subr.mxu0 0.0
    %629 = vmatpush1.msra.mxu0 0.0
    %630 = vmatprep.subr.mxu0 0.0
    %631 = vmatpush1.msra.mxu0 0.0
    %632 = vmatprep.subr.mxu0 0.0
    %633 = vmatpush1.msra.mxu0 0.0
    %634 = vmatprep.subr.mxu0 0.0
    %635 = vmatpush1.msra.mxu0 0.0
    %636 = vmatprep.subr.mxu0 0.0
    %637 = vmatpush1.msra.mxu0 0.0
    %638 = vmatprep.subr.mxu0 0.0
    %639 = vmatpush1.msra.mxu0 0.0
    %640 = vmatprep.subr.mxu0 0.0
    %641 = vmatpush1.msra.mxu0 0.0
    %642 = vmatprep.subr.mxu0 0.0
    %643 = vmatpush1.msra.mxu0 0.0
    %644 = vmatprep.subr.mxu0 0.0
    %645 = vmatpush1.msra.mxu0 0.0
    %646 = vmatprep.subr.mxu0 0.0
    %647 = vmatpush1.msra.mxu0 0.0
    %648 = vmatprep.subr.mxu0 0.0
    %649 = vmatpush1.msra.mxu0 0.0
    %650 = vmatprep.subr.mxu0 0.0
    %651 = vmatpush1.msra.mxu0 0.0
    %652 = vmatprep.subr.mxu0 0.0
    %653 = vmatpush1.msra.mxu0 0.0
    %654 = vmatprep.subr.mxu0 0.0
    %655 = vmatpush1.msra.mxu0 0.0
    %656 = vmatprep.subr.mxu0 0.0
    %657 = vmatpush1.msra.mxu0 0.0
    %658 = vmatprep.subr.mxu0 0.0
    %659 = vmatpush1.msra.mxu0 0.0
    %660 = vmatprep.subr.mxu0 0.0
    %661 = vmatpush1.msra.mxu0 0.0
    %662 = vmatprep.subr.mxu0 0.0
    %663 = vmatpush1.msra.mxu0 0.0
    %664 = vmatprep.subr.mxu0 0.0
    %665 = vmatpush1.msra.mxu0 0.0
    %666 = vmatprep.subr.mxu0 0.0
    %667 = vmatpush1.msra.mxu0 0.0
    %668 = vmatprep.subr.mxu0 0.0
    %669 = vmatpush1.msra.mxu0 0.0
    %670 = vmatprep.subr.mxu0 0.0
    %671 = vmatpush1.msra.mxu0 0.0
    %672 = vmatprep.subr.mxu0 0.0
    %673 = vmatpush1.msra.mxu0 0.0
    %674 = vmatprep.subr.mxu0 0.0
    %675 = vmatpush1.msra.mxu0 0.0
    %676 = vmatprep.subr.mxu0 0.0
    %677 = vmatpush1.msra.mxu0 0.0
    %678 = vmatprep.mubr.f32.mxu0 0.0
    %679 = vmatmul.mubr.f32.gmra.mrb[0].mxu0 %v597
    %v680 = vpop.f32.mrb[0].mxu0
    %v681 = vadd.f32 %v568, %v680
    %v682 = vpop.f32.mrb[0].mxu0
    %683 = vmatprep.mubr.f32.mxu0 0.0
    %684 = vmatmul.mubr.f32.gmra.mrb[0].mxu0 %v600
    %v685 = vpop.f32.mrb[0].mxu0
    %v686 = vadd.f32 %v573, %v685
    %v687 = vpop.f32.mrb[0].mxu0
    %688 = vmatprep.mubr.f32.mxu0 0.0
    %689 = vmatmul.mubr.f32.gmra.mrb[0].mxu0 %v603
    %v690 = vpop.f32.mrb[0].mxu0
    %v691 = vadd.f32 %v578, %v690
    %v692 = vpop.f32.mrb[0].mxu0
    %693 = vmatprep.mubr.f32.mxu0 0.0
    %694 = vmatmul.mubr.f32.gmra.mrb[0].mxu0 %v606
    %v695 = vpop.f32.mrb[0].mxu0
    %v696 = vadd.f32 %v583, %v695
    %v697 = vpop.f32.mrb[0].mxu0
    %698 = vmatprep.mubr.f32.mxu0 0.0
    %699 = vmatmul.mubr.f32.gmra.mrb[0].mxu0 %v609
    %v700 = vpop.f32.mrb[0].mxu0
    %v701 = vadd.f32 %v588, %v700
    %v702 = vpop.f32.mrb[0].mxu0
    %703 = vmatprep.mubr.f32.mxu0 0.0
    %704 = vmatmul.mubr.f32.gmra.mrb[0].mxu0 %v612
    %v705 = vpop.f32.mrb[0].mxu0
    %v706 = vadd.f32 %v593, %v705
    %v707 = vpop.f32.mrb[0].mxu0
    %708 = vdwg.mxu0
    %v710 = vsel %vm429, %v472, 0
    %v713 = vsel %vm429, %v474, 0
    %v716 = vsel %vm429, %v476, 0
    %v719 = vsel %vm429, %v478, 0
    %v722 = vsel %vm429, %v480, 0
    %v725 = vsel %vm429, %v482, 0
    %727 = vmatprep.subr.mxu0 0.0
    %728 = vmatpush1.msra.mxu0 %v469
    %729 = vmatprep.subr.mxu0 0.0
    %730 = vmatpush1.msra.mxu0 %v470
    %731 = vmatprep.subr.mxu0 0.0
    %732 = vmatpush1.msra.mxu0 0.0
    %733 = vmatprep.subr.mxu0 0.0
    %734 = vmatpush1.msra.mxu0 0.0
    %735 = vmatprep.subr.mxu0 0.0
    %736 = vmatpush1.msra.mxu0 0.0
    %737 = vmatprep.subr.mxu0 0.0
    %738 = vmatpush1.msra.mxu0 0.0
    %739 = vmatprep.subr.mxu0 0.0
    %740 = vmatpush1.msra.mxu0 0.0
    %741 = vmatprep.subr.mxu0 0.0
    %742 = vmatpush1.msra.mxu0 0.0
    %743 = vmatprep.subr.mxu0 0.0
    %744 = vmatpush1.msra.mxu0 0.0
    %745 = vmatprep.subr.mxu0 0.0
    %746 = vmatpush1.msra.mxu0 0.0
    %747 = vmatprep.subr.mxu0 0.0
    %748 = vmatpush1.msra.mxu0 0.0
    %749 = vmatprep.subr.mxu0 0.0
    %750 = vmatpush1.msra.mxu0 0.0
    %751 = vmatprep.subr.mxu0 0.0
    %752 = vmatpush1.msra.mxu0 0.0
    %753 = vmatprep.subr.mxu0 0.0
    %754 = vmatpush1.msra.mxu0 0.0
    %755 = vmatprep.subr.mxu0 0.0
    %756 = vmatpush1.msra.mxu0 0.0
    %757 = vmatprep.subr.mxu0 0.0
    %758 = vmatpush1.msra.mxu0 0.0
    %759 = vmatprep.subr.mxu0 0.0
    %760 = vmatpush1.msra.mxu0 0.0
    %761 = vmatprep.subr.mxu0 0.0
    %762 = vmatpush1.msra.mxu0 0.0
    %763 = vmatprep.subr.mxu0 0.0
    %764 = vmatpush1.msra.mxu0 0.0
    %765 = vmatprep.subr.mxu0 0.0
    %766 = vmatpush1.msra.mxu0 0.0
    %767 = vmatprep.subr.mxu0 0.0
    %768 = vmatpush1.msra.mxu0 0.0
    %769 = vmatprep.subr.mxu0 0.0
    %770 = vmatpush1.msra.mxu0 0.0
    %771 = vmatprep.subr.mxu0 0.0
    %772 = vmatpush1.msra.mxu0 0.0
    %773 = vmatprep.subr.mxu0 0.0
    %774 = vmatpush1.msra.mxu0 0.0
    %775 = vmatprep.subr.mxu0 0.0
    %776 = vmatpush1.msra.mxu0 0.0
    %777 = vmatprep.subr.mxu0 0.0
    %778 = vmatpush1.msra.mxu0 0.0
    %779 = vmatprep.subr.mxu0 0.0
    %780 = vmatpush1.msra.mxu0 0.0
    %781 = vmatprep.subr.mxu0 0.0
    %782 = vmatpush1.msra.mxu0 0.0
    %783 = vmatprep.subr.mxu0 0.0
    %784 = vmatpush1.msra.mxu0 0.0
    %785 = vmatprep.subr.mxu0 0.0
    %786 = vmatpush1.msra.mxu0 0.0
    %787 = vmatprep.subr.mxu0 0.0
    %788 = vmatpush1.msra.mxu0 0.0
    %789 = vmatprep.subr.mxu0 0.0
    %790 = vmatpush1.msra.mxu0 0.0
    %791 = vmatprep.mubr.f32.mxu0 0.0
    %792 = vmatmul.mubr.f32.gmra.mrb[0].mxu0 %v710
    %v793 = vpop.f32.mrb[0].mxu0
    %v794 = vadd.f32 0.0, %v793
    %v795 = vpop.f32.mrb[0].mxu0
    %796 = vmatprep.mubr.f32.mxu0 0.0
    %797 = vmatmul.mubr.f32.gmra.mrb[0].mxu0 %v713
    %v798 = vpop.f32.mrb[0].mxu0
    %v799 = vadd.f32 0.0, %v798
    %v800 = vpop.f32.mrb[0].mxu0
    %801 = vmatprep.mubr.f32.mxu0 0.0
    %802 = vmatmul.mubr.f32.gmra.mrb[0].mxu0 %v716
    %v803 = vpop.f32.mrb[0].mxu0
    %v804 = vadd.f32 0.0, %v803
    %v805 = vpop.f32.mrb[0].mxu0
    %806 = vmatprep.mubr.f32.mxu0 0.0
    %807 = vmatmul.mubr.f32.gmra.mrb[0].mxu0 %v719
    %v808 = vpop.f32.mrb[0].mxu0
    %v809 = vadd.f32 0.0, %v808
    %v810 = vpop.f32.mrb[0].mxu0
    %811 = vmatprep.mubr.f32.mxu0 0.0
    %812 = vmatmul.mubr.f32.gmra.mrb[0].mxu0 %v722
    %v813 = vpop.f32.mrb[0].mxu0
    %v814 = vadd.f32 0.0, %v813
    %v815 = vpop.f32.mrb[0].mxu0
    %816 = vmatprep.mubr.f32.mxu0 0.0
    %817 = vmatmul.mubr.f32.gmra.mrb[0].mxu0 %v725
    %v818 = vpop.f32.mrb[0].mxu0
    %v819 = vadd.f32 0.0, %v818
    %v820 = vpop.f32.mrb[0].mxu0
    %821 = vdwg.mxu0
    %822 = vmatprep.subr.mxu0 0.0
    %823 = vmatpush1.msra.mxu0 %v444
    %824 = vmatprep.subr.mxu0 0.0
    %825 = vmatpush1.msra.mxu0 %v445
    %826 = vmatprep.subr.mxu0 0.0
    %827 = vmatpush1.msra.mxu0 0.0
    %828 = vmatprep.subr.mxu0 0.0
    %829 = vmatpush1.msra.mxu0 0.0
    %830 = vmatprep.subr.mxu0 0.0
    %831 = vmatpush1.msra.mxu0 0.0
    %832 = vmatprep.subr.mxu0 0.0
    %833 = vmatpush1.msra.mxu0 0.0
    %834 = vmatprep.subr.mxu0 0.0
    %835 = vmatpush1.msra.mxu0 0.0
    %836 = vmatprep.subr.mxu0 0.0
    %837 = vmatpush1.msra.mxu0 0.0
    %838 = vmatprep.subr.mxu0 0.0
    %839 = vmatpush1.msra.mxu0 0.0
    %840 = vmatprep.subr.mxu0 0.0
    %841 = vmatpush1.msra.mxu0 0.0
    %842 = vmatprep.subr.mxu0 0.0
    %843 = vmatpush1.msra.mxu0 0.0
    %844 = vmatprep.subr.mxu0 0.0
    %845 = vmatpush1.msra.mxu0 0.0
    %846 = vmatprep.subr.mxu0 0.0
    %847 = vmatpush1.msra.mxu0 0.0
    %848 = vmatprep.subr.mxu0 0.0
    %849 = vmatpush1.msra.mxu0 0.0
    %850 = vmatprep.subr.mxu0 0.0
    %851 = vmatpush1.msra.mxu0 0.0
    %852 = vmatprep.subr.mxu0 0.0
    %853 = vmatpush1.msra.mxu0 0.0
    %854 = vmatprep.subr.mxu0 0.0
    %855 = vmatpush1.msra.mxu0 0.0
    %856 = vmatprep.subr.mxu0 0.0
    %857 = vmatpush1.msra.mxu0 0.0
    %858 = vmatprep.subr.mxu0 0.0
    %859 = vmatpush1.msra.mxu0 0.0
    %860 = vmatprep.subr.mxu0 0.0
    %861 = vmatpush1.msra.mxu0 0.0
    %862 = vmatprep.subr.mxu0 0.0
    %863 = vmatpush1.msra.mxu0 0.0
    %864 = vmatprep.subr.mxu0 0.0
    %865 = vmatpush1.msra.mxu0 0.0
    %866 = vmatprep.subr.mxu0 0.0
    %867 = vmatpush1.msra.mxu0 0.0
    %868 = vmatprep.subr.mxu0 0.0
    %869 = vmatpush1.msra.mxu0 0.0
    %870 = vmatprep.subr.mxu0 0.0
    %871 = vmatpush1.msra.mxu0 0.0
    %872 = vmatprep.subr.mxu0 0.0
    %873 = vmatpush1.msra.mxu0 0.0
    %874 = vmatprep.subr.mxu0 0.0
    %875 = vmatpush1.msra.mxu0 0.0
    %876 = vmatprep.subr.mxu0 0.0
    %877 = vmatpush1.msra.mxu0 0.0
    %878 = vmatprep.subr.mxu0 0.0
    %879 = vmatpush1.msra.mxu0 0.0
    %880 = vmatprep.subr.mxu0 0.0
    %881 = vmatpush1.msra.mxu0 0.0
    %882 = vmatprep.subr.mxu0 0.0
    %883 = vmatpush1.msra.mxu0 0.0
    %884 = vmatprep.subr.mxu0 0.0
    %885 = vmatpush1.msra.mxu0 0.0
    %886 = vmatprep.mubr.f32.mxu0 0.0
    %887 = vmatmul.mubr.f32.gmra.mrb[0].mxu0 %v484
    %v888 = vpop.f32.mrb[0].mxu0
    %v889 = vadd.f32 %v794, %v888
    %v890 = vpop.f32.mrb[0].mxu0
    %891 = vmatprep.mubr.f32.mxu0 0.0
    %892 = vmatmul.mubr.f32.gmra.mrb[0].mxu0 %v487
    %v893 = vpop.f32.mrb[0].mxu0
    %v894 = vadd.f32 %v799, %v893
    %v895 = vpop.f32.mrb[0].mxu0
    %896 = vmatprep.mubr.f32.mxu0 0.0
    %897 = vmatmul.mubr.f32.gmra.mrb[0].mxu0 %v490
    %v898 = vpop.f32.mrb[0].mxu0
    %v899 = vadd.f32 %v804, %v898
    %v900 = vpop.f32.mrb[0].mxu0
    %901 = vmatprep.mubr.f32.mxu0 0.0
    %902 = vmatmul.mubr.f32.gmra.mrb[0].mxu0 %v493
    %v903 = vpop.f32.mrb[0].mxu0
    %v904 = vadd.f32 %v809, %v903
    %v905 = vpop.f32.mrb[0].mxu0
    %906 = vmatprep.mubr.f32.mxu0 0.0
    %907 = vmatmul.mubr.f32.gmra.mrb[0].mxu0 %v496
    %v908 = vpop.f32.mrb[0].mxu0
    %v909 = vadd.f32 %v814, %v908
    %v910 = vpop.f32.mrb[0].mxu0
    %911 = vmatprep.mubr.f32.mxu0 0.0
    %912 = vmatmul.mubr.f32.gmra.mrb[0].mxu0 %v499
    %v913 = vpop.f32.mrb[0].mxu0
    %v914 = vadd.f32 %v819, %v913
    %v915 = vpop.f32.mrb[0].mxu0
    %916 = vdwg.mxu0
    %v917 = vld [vmem:[%s1 + $0x30] sm:$0xff]
    %v918 = vld [vmem:[%s1 + $0x38] sm:$0xff]
    %s919 = scalar_lea.vmem [#allocation2], 3
    %v920 = vld [vmem:[%s919] ss:$2 sm:$0xff]
    %s921 = scalar_lea.vmem [#allocation2], 19
    %v922 = vld [vmem:[%s921] ss:$2 sm:$0xff]
    %s923 = scalar_lea.vmem [#allocation2], 35
    %v924 = vld [vmem:[%s923] ss:$2 sm:$0xff]
    %s925 = scalar_lea.vmem [#allocation2], 59
    %v926 = vld [vmem:[%s925] ss:$2 sm:$0xff]
    %s927 = scalar_lea.vmem [#allocation2], 75
    %v928 = vld [vmem:[%s927] ss:$2 sm:$0xff]
    %s929 = scalar_lea.vmem [#allocation2], 91
    %v930 = vld [vmem:[%s929] ss:$2 sm:$0xff]
    %931 = vmatprep.subr.mxu0 0.0
    %932 = vmatpush1.msra.mxu0 %v917
    %933 = vmatprep.subr.mxu0 0.0
    %934 = vmatpush1.msra.mxu0 %v918
    %935 = vmatprep.subr.mxu0 0.0
    %936 = vmatpush1.msra.mxu0 0.0
    %937 = vmatprep.subr.mxu0 0.0
    %938 = vmatpush1.msra.mxu0 0.0
    %939 = vmatprep.subr.mxu0 0.0
    %940 = vmatpush1.msra.mxu0 0.0
    %941 = vmatprep.subr.mxu0 0.0
    %942 = vmatpush1.msra.mxu0 0.0
    %943 = vmatprep.subr.mxu0 0.0
    %944 = vmatpush1.msra.mxu0 0.0
    %945 = vmatprep.subr.mxu0 0.0
    %946 = vmatpush1.msra.mxu0 0.0
    %947 = vmatprep.subr.mxu0 0.0
    %948 = vmatpush1.msra.mxu0 0.0
    %949 = vmatprep.subr.mxu0 0.0
    %950 = vmatpush1.msra.mxu0 0.0
    %951 = vmatprep.subr.mxu0 0.0
    %952 = vmatpush1.msra.mxu0 0.0
    %953 = vmatprep.subr.mxu0 0.0
    %954 = vmatpush1.msra.mxu0 0.0
    %955 = vmatprep.subr.mxu0 0.0
    %956 = vmatpush1.msra.mxu0 0.0
    %957 = vmatprep.subr.mxu0 0.0
    %958 = vmatpush1.msra.mxu0 0.0
    %959 = vmatprep.subr.mxu0 0.0
    %960 = vmatpush1.msra.mxu0 0.0
    %961 = vmatprep.subr.mxu0 0.0
    %962 = vmatpush1.msra.mxu0 0.0
    %963 = vmatprep.subr.mxu0 0.0
    %964 = vmatpush1.msra.mxu0 0.0
    %965 = vmatprep.subr.mxu0 0.0
    %966 = vmatpush1.msra.mxu0 0.0
    %967 = vmatprep.subr.mxu0 0.0
    %968 = vmatpush1.msra.mxu0 0.0
    %969 = vmatprep.subr.mxu0 0.0
    %970 = vmatpush1.msra.mxu0 0.0
    %971 = vmatprep.subr.mxu0 0.0
    %972 = vmatpush1.msra.mxu0 0.0
    %973 = vmatprep.subr.mxu0 0.0
    %974 = vmatpush1.msra.mxu0 0.0
    %975 = vmatprep.subr.mxu0 0.0
    %976 = vmatpush1.msra.mxu0 0.0
    %977 = vmatprep.subr.mxu0 0.0
    %978 = vmatpush1.msra.mxu0 0.0
    %979 = vmatprep.subr.mxu0 0.0
    %980 = vmatpush1.msra.mxu0 0.0
    %981 = vmatprep.subr.mxu0 0.0
    %982 = vmatpush1.msra.mxu0 0.0
    %983 = vmatprep.subr.mxu0 0.0
    %984 = vmatpush1.msra.mxu0 0.0
    %985 = vmatprep.subr.mxu0 0.0
    %986 = vmatpush1.msra.mxu0 0.0
    %987 = vmatprep.subr.mxu0 0.0
    %988 = vmatpush1.msra.mxu0 0.0
    %989 = vmatprep.subr.mxu0 0.0
    %990 = vmatpush1.msra.mxu0 0.0
    %991 = vmatprep.subr.mxu0 0.0
    %992 = vmatpush1.msra.mxu0 0.0
    %993 = vmatprep.subr.mxu0 0.0
    %994 = vmatpush1.msra.mxu0 0.0
    %995 = vmatprep.mubr.f32.mxu0 0.0
    %996 = vmatmul.mubr.f32.gmra.mrb[0].mxu0 %v710
    %v997 = vpop.f32.mrb[0].mxu0
    %v998 = vadd.f32 0.0, %v997
    %v999 = vpop.f32.mrb[0].mxu0
    %1000 = vmatprep.mubr.f32.mxu0 0.0
    %1001 = vmatmul.mubr.f32.gmra.mrb[0].mxu0 %v713
    %v1002 = vpop.f32.mrb[0].mxu0
    %v1003 = vadd.f32 0.0, %v1002
    %v1004 = vpop.f32.mrb[0].mxu0
    %1005 = vmatprep.mubr.f32.mxu0 0.0
    %1006 = vmatmul.mubr.f32.gmra.mrb[0].mxu0 %v716
    %v1007 = vpop.f32.mrb[0].mxu0
    %v1008 = vadd.f32 0.0, %v1007
    %v1009 = vpop.f32.mrb[0].mxu0
    %1010 = vmatprep.mubr.f32.mxu0 0.0
    %1011 = vmatmul.mubr.f32.gmra.mrb[0].mxu0 %v719
    %v1012 = vpop.f32.mrb[0].mxu0
    %v1013 = vadd.f32 0.0, %v1012
    %v1014 = vpop.f32.mrb[0].mxu0
    %1015 = vmatprep.mubr.f32.mxu0 0.0
    %1016 = vmatmul.mubr.f32.gmra.mrb[0].mxu0 %v722
    %v1017 = vpop.f32.mrb[0].mxu0
    %v1018 = vadd.f32 0.0, %v1017
    %v1019 = vpop.f32.mrb[0].mxu0
    %1020 = vmatprep.mubr.f32.mxu0 0.0
    %1021 = vmatmul.mubr.f32.gmra.mrb[0].mxu0 %v725
    %v1022 = vpop.f32.mrb[0].mxu0
    %v1023 = vadd.f32 0.0, %v1022
    %v1024 = vpop.f32.mrb[0].mxu0
    %1025 = vdwg.mxu0
    %v1026 = vadd.f32 %v681, %v998
    %v1027 = vadd.f32 %v686, %v1003
    %v1028 = vadd.f32 %v691, %v1008
    %v1029 = vadd.f32 %v696, %v1013
    %v1030 = vadd.f32 %v701, %v1018
    %v1031 = vadd.f32 %v706, %v1023
    %v1033 = vsel %vm429, %v920, 0
    %v1036 = vsel %vm429, %v922, 0
    %v1039 = vsel %vm429, %v924, 0
    %v1042 = vsel %vm429, %v926, 0
    %v1045 = vsel %vm429, %v928, 0
    %v1048 = vsel %vm429, %v930, 0
    %1050 = vmatprep.subr.mxu0 0.0
    %1051 = vmatpush1.msra.mxu0 %v917
    %1052 = vmatprep.subr.mxu0 0.0
    %1053 = vmatpush1.msra.mxu0 %v918
    %1054 = vmatprep.subr.mxu0 0.0
    %1055 = vmatpush1.msra.mxu0 0.0
    %1056 = vmatprep.subr.mxu0 0.0
    %1057 = vmatpush1.msra.mxu0 0.0
    %1058 = vmatprep.subr.mxu0 0.0
    %1059 = vmatpush1.msra.mxu0 0.0
    %1060 = vmatprep.subr.mxu0 0.0
    %1061 = vmatpush1.msra.mxu0 0.0
    %1062 = vmatprep.subr.mxu0 0.0
    %1063 = vmatpush1.msra.mxu0 0.0
    %1064 = vmatprep.subr.mxu0 0.0
    %1065 = vmatpush1.msra.mxu0 0.0
    %1066 = vmatprep.subr.mxu0 0.0
    %1067 = vmatpush1.msra.mxu0 0.0
    %1068 = vmatprep.subr.mxu0 0.0
    %1069 = vmatpush1.msra.mxu0 0.0
    %1070 = vmatprep.subr.mxu0 0.0
    %1071 = vmatpush1.msra.mxu0 0.0
    %1072 = vmatprep.subr.mxu0 0.0
    %1073 = vmatpush1.msra.mxu0 0.0
    %1074 = vmatprep.subr.mxu0 0.0
    %1075 = vmatpush1.msra.mxu0 0.0
    %1076 = vmatprep.subr.mxu0 0.0
    %1077 = vmatpush1.msra.mxu0 0.0
    %1078 = vmatprep.subr.mxu0 0.0
    %1079 = vmatpush1.msra.mxu0 0.0
    %1080 = vmatprep.subr.mxu0 0.0
    %1081 = vmatpush1.msra.mxu0 0.0
    %1082 = vmatprep.subr.mxu0 0.0
    %1083 = vmatpush1.msra.mxu0 0.0
    %1084 = vmatprep.subr.mxu0 0.0
    %1085 = vmatpush1.msra.mxu0 0.0
    %1086 = vmatprep.subr.mxu0 0.0
    %1087 = vmatpush1.msra.mxu0 0.0
    %1088 = vmatprep.subr.mxu0 0.0
    %1089 = vmatpush1.msra.mxu0 0.0
    %1090 = vmatprep.subr.mxu0 0.0
    %1091 = vmatpush1.msra.mxu0 0.0
    %1092 = vmatprep.subr.mxu0 0.0
    %1093 = vmatpush1.msra.mxu0 0.0
    %1094 = vmatprep.subr.mxu0 0.0
    %1095 = vmatpush1.msra.mxu0 0.0
    %1096 = vmatprep.subr.mxu0 0.0
    %1097 = vmatpush1.msra.mxu0 0.0
    %1098 = vmatprep.subr.mxu0 0.0
    %1099 = vmatpush1.msra.mxu0 0.0
    %1100 = vmatprep.subr.mxu0 0.0
    %1101 = vmatpush1.msra.mxu0 0.0
    %1102 = vmatprep.subr.mxu0 0.0
    %1103 = vmatpush1.msra.mxu0 0.0
    %1104 = vmatprep.subr.mxu0 0.0
    %1105 = vmatpush1.msra.mxu0 0.0
    %1106 = vmatprep.subr.mxu0 0.0
    %1107 = vmatpush1.msra.mxu0 0.0
    %1108 = vmatprep.subr.mxu0 0.0
    %1109 = vmatpush1.msra.mxu0 0.0
    %1110 = vmatprep.subr.mxu0 0.0
    %1111 = vmatpush1.msra.mxu0 0.0
    %1112 = vmatprep.subr.mxu0 0.0
    %1113 = vmatpush1.msra.mxu0 0.0
    %1114 = vmatprep.mubr.f32.mxu0 0.0
    %1115 = vmatmul.mubr.f32.gmra.mrb[0].mxu0 %v1033
    %v1116 = vpop.f32.mrb[0].mxu0
    %v1117 = vadd.f32 0.0, %v1116
    %v1118 = vpop.f32.mrb[0].mxu0
    %1119 = vmatprep.mubr.f32.mxu0 0.0
    %1120 = vmatmul.mubr.f32.gmra.mrb[0].mxu0 %v1036
    %v1121 = vpop.f32.mrb[0].mxu0
    %v1122 = vadd.f32 0.0, %v1121
    %v1123 = vpop.f32.mrb[0].mxu0
    %1124 = vmatprep.mubr.f32.mxu0 0.0
    %1125 = vmatmul.mubr.f32.gmra.mrb[0].mxu0 %v1039
    %v1126 = vpop.f32.mrb[0].mxu0
    %v1127 = vadd.f32 0.0, %v1126
    %v1128 = vpop.f32.mrb[0].mxu0
    %1129 = vmatprep.mubr.f32.mxu0 0.0
    %1130 = vmatmul.mubr.f32.gmra.mrb[0].mxu0 %v1042
    %v1131 = vpop.f32.mrb[0].mxu0
    %v1132 = vadd.f32 0.0, %v1131
    %v1133 = vpop.f32.mrb[0].mxu0
    %1134 = vmatprep.mubr.f32.mxu0 0.0
    %1135 = vmatmul.mubr.f32.gmra.mrb[0].mxu0 %v1045
    %v1136 = vpop.f32.mrb[0].mxu0
    %v1137 = vadd.f32 0.0, %v1136
    %v1138 = vpop.f32.mrb[0].mxu0
    %1139 = vmatprep.mubr.f32.mxu0 0.0
    %1140 = vmatmul.mubr.f32.gmra.mrb[0].mxu0 %v1048
    %v1141 = vpop.f32.mrb[0].mxu0
    %v1142 = vadd.f32 0.0, %v1141
    %v1143 = vpop.f32.mrb[0].mxu0
    %1144 = vdwg.mxu0
    %v1145 = vadd.f32 %v889, %v1117
    %v1146 = vadd.f32 %v894, %v1122
    %v1147 = vadd.f32 %v899, %v1127
    %v1148 = vadd.f32 %v904, %v1132
    %v1149 = vadd.f32 %v909, %v1137
    %v1150 = vadd.f32 %v914, %v1142
    %v1151 = vld [vmem:[%s1 + $0x40] sm:$0xff]
    %v1152 = vld [vmem:[%s1 + $0x48] sm:$0xff]
    %s1153 = scalar_lea.vmem [#allocation2], 4
    %v1154 = vld [vmem:[%s1153] ss:$2 sm:$0xff]
    %s1155 = scalar_lea.vmem [#allocation2], 20
    %v1156 = vld [vmem:[%s1155] ss:$2 sm:$0xff]
    %s1157 = scalar_lea.vmem [#allocation2], 36
    %v1158 = vld [vmem:[%s1157] ss:$2 sm:$0xff]
    %s1159 = scalar_lea.vmem [#allocation2], 60
    %v1160 = vld [vmem:[%s1159] ss:$2 sm:$0xff]
    %s1161 = scalar_lea.vmem [#allocation2], 76
    %v1162 = vld [vmem:[%s1161] ss:$2 sm:$0xff]
    %s1163 = scalar_lea.vmem [#allocation2], 92
    %v1164 = vld [vmem:[%s1163] ss:$2 sm:$0xff]
    %1165 = vmatprep.subr.mxu0 0.0
    %1166 = vmatpush1.msra.mxu0 %v1151
    %1167 = vmatprep.subr.mxu0 0.0
    %1168 = vmatpush1.msra.mxu0 %v1152
    %1169 = vmatprep.subr.mxu0 0.0
    %1170 = vmatpush1.msra.mxu0 0.0
    %1171 = vmatprep.subr.mxu0 0.0
    %1172 = vmatpush1.msra.mxu0 0.0
    %1173 = vmatprep.subr.mxu0 0.0
    %1174 = vmatpush1.msra.mxu0 0.0
    %1175 = vmatprep.subr.mxu0 0.0
    %1176 = vmatpush1.msra.mxu0 0.0
    %1177 = vmatprep.subr.mxu0 0.0
    %1178 = vmatpush1.msra.mxu0 0.0
    %1179 = vmatprep.subr.mxu0 0.0
    %1180 = vmatpush1.msra.mxu0 0.0
    %1181 = vmatprep.subr.mxu0 0.0
    %1182 = vmatpush1.msra.mxu0 0.0
    %1183 = vmatprep.subr.mxu0 0.0
    %1184 = vmatpush1.msra.mxu0 0.0
    %1185 = vmatprep.subr.mxu0 0.0
    %1186 = vmatpush1.msra.mxu0 0.0
    %1187 = vmatprep.subr.mxu0 0.0
    %1188 = vmatpush1.msra.mxu0 0.0
    %1189 = vmatprep.subr.mxu0 0.0
    %1190 = vmatpush1.msra.mxu0 0.0
    %1191 = vmatprep.subr.mxu0 0.0
    %1192 = vmatpush1.msra.mxu0 0.0
    %1193 = vmatprep.subr.mxu0 0.0
    %1194 = vmatpush1.msra.mxu0 0.0
    %1195 = vmatprep.subr.mxu0 0.0
    %1196 = vmatpush1.msra.mxu0 0.0
    %1197 = vmatprep.subr.mxu0 0.0
    %1198 = vmatpush1.msra.mxu0 0.0
    %1199 = vmatprep.subr.mxu0 0.0
    %1200 = vmatpush1.msra.mxu0 0.0
    %1201 = vmatprep.subr.mxu0 0.0
    %1202 = vmatpush1.msra.mxu0 0.0
    %1203 = vmatprep.subr.mxu0 0.0
    %1204 = vmatpush1.msra.mxu0 0.0
    %1205 = vmatprep.subr.mxu0 0.0
    %1206 = vmatpush1.msra.mxu0 0.0
    %1207 = vmatprep.subr.mxu0 0.0
    %1208 = vmatpush1.msra.mxu0 0.0
    %1209 = vmatprep.subr.mxu0 0.0
    %1210 = vmatpush1.msra.mxu0 0.0
    %1211 = vmatprep.subr.mxu0 0.0
    %1212 = vmatpush1.msra.mxu0 0.0
    %1213 = vmatprep.subr.mxu0 0.0
    %1214 = vmatpush1.msra.mxu0 0.0
    %1215 = vmatprep.subr.mxu0 0.0
    %1216 = vmatpush1.msra.mxu0 0.0
    %1217 = vmatprep.subr.mxu0 0.0
    %1218 = vmatpush1.msra.mxu0 0.0
    %1219 = vmatprep.subr.mxu0 0.0
    %1220 = vmatpush1.msra.mxu0 0.0
    %1221 = vmatprep.subr.mxu0 0.0
    %1222 = vmatpush1.msra.mxu0 0.0
    %1223 = vmatprep.subr.mxu0 0.0
    %1224 = vmatpush1.msra.mxu0 0.0
    %1225 = vmatprep.subr.mxu0 0.0
    %1226 = vmatpush1.msra.mxu0 0.0
    %1227 = vmatprep.subr.mxu0 0.0
    %1228 = vmatpush1.msra.mxu0 0.0
    %1229 = vmatprep.mubr.f32.mxu0 0.0
    %1230 = vmatmul.mubr.f32.gmra.mrb[0].mxu0 %v1033
    %v1231 = vpop.f32.mrb[0].mxu0
    %v1232 = vadd.f32 0.0, %v1231
    %v1233 = vpop.f32.mrb[0].mxu0
    %1234 = vmatprep.mubr.f32.mxu0 0.0
    %1235 = vmatmul.mubr.f32.gmra.mrb[0].mxu0 %v1036
    %v1236 = vpop.f32.mrb[0].mxu0
    %v1237 = vadd.f32 0.0, %v1236
    %v1238 = vpop.f32.mrb[0].mxu0
    %1239 = vmatprep.mubr.f32.mxu0 0.0
    %1240 = vmatmul.mubr.f32.gmra.mrb[0].mxu0 %v1039
    %v1241 = vpop.f32.mrb[0].mxu0
    %v1242 = vadd.f32 0.0, %v1241
    %v1243 = vpop.f32.mrb[0].mxu0
    %1244 = vmatprep.mubr.f32.mxu0 0.0
    %1245 = vmatmul.mubr.f32.gmra.mrb[0].mxu0 %v1042
    %v1246 = vpop.f32.mrb[0].mxu0
    %v1247 = vadd.f32 0.0, %v1246
    %v1248 = vpop.f32.mrb[0].mxu0
    %1249 = vmatprep.mubr.f32.mxu0 0.0
    %1250 = vmatmul.mubr.f32.gmra.mrb[0].mxu0 %v1045
    %v1251 = vpop.f32.mrb[0].mxu0
    %v1252 = vadd.f32 0.0, %v1251
    %v1253 = vpop.f32.mrb[0].mxu0
    %1254 = vmatprep.mubr.f32.mxu0 0.0
    %1255 = vmatmul.mubr.f32.gmra.mrb[0].mxu0 %v1048
    %v1256 = vpop.f32.mrb[0].mxu0
    %v1257 = vadd.f32 0.0, %v1256
    %v1258 = vpop.f32.mrb[0].mxu0
    %1259 = vdwg.mxu0
    %v1260 = vadd.f32 %v1026, %v1232
    %v1261 = vadd.f32 %v1027, %v1237
    %v1262 = vadd.f32 %v1028, %v1242
    %v1263 = vadd.f32 %v1029, %v1247
    %v1264 = vadd.f32 %v1030, %v1252
    %v1265 = vadd.f32 %v1031, %v1257
    %v1267 = vsel %vm429, %v1154, 0
    %v1270 = vsel %vm429, %v1156, 0
    %v1273 = vsel %vm429, %v1158, 0
    %v1276 = vsel %vm429, %v1160, 0
    %v1279 = vsel %vm429, %v1162, 0
    %v1282 = vsel %vm429, %v1164, 0
    %1284 = vmatprep.subr.mxu0 0.0
    %1285 = vmatpush1.msra.mxu0 %v1151
    %1286 = vmatprep.subr.mxu0 0.0
    %1287 = vmatpush1.msra.mxu0 %v1152
    %1288 = vmatprep.subr.mxu0 0.0
    %1289 = vmatpush1.msra.mxu0 0.0
    %1290 = vmatprep.subr.mxu0 0.0
    %1291 = vmatpush1.msra.mxu0 0.0
    %1292 = vmatprep.subr.mxu0 0.0
    %1293 = vmatpush1.msra.mxu0 0.0
    %1294 = vmatprep.subr.mxu0 0.0
    %1295 = vmatpush1.msra.mxu0 0.0
    %1296 = vmatprep.subr.mxu0 0.0
    %1297 = vmatpush1.msra.mxu0 0.0
    %1298 = vmatprep.subr.mxu0 0.0
    %1299 = vmatpush1.msra.mxu0 0.0
    %1300 = vmatprep.subr.mxu0 0.0
    %1301 = vmatpush1.msra.mxu0 0.0
    %1302 = vmatprep.subr.mxu0 0.0
    %1303 = vmatpush1.msra.mxu0 0.0
    %1304 = vmatprep.subr.mxu0 0.0
    %1305 = vmatpush1.msra.mxu0 0.0
    %1306 = vmatprep.subr.mxu0 0.0
    %1307 = vmatpush1.msra.mxu0 0.0
    %1308 = vmatprep.subr.mxu0 0.0
    %1309 = vmatpush1.msra.mxu0 0.0
    %1310 = vmatprep.subr.mxu0 0.0
    %1311 = vmatpush1.msra.mxu0 0.0
    %1312 = vmatprep.subr.mxu0 0.0
    %1313 = vmatpush1.msra.mxu0 0.0
    %1314 = vmatprep.subr.mxu0 0.0
    %1315 = vmatpush1.msra.mxu0 0.0
    %1316 = vmatprep.subr.mxu0 0.0
    %1317 = vmatpush1.msra.mxu0 0.0
    %1318 = vmatprep.subr.mxu0 0.0
    %1319 = vmatpush1.msra.mxu0 0.0
    %1320 = vmatprep.subr.mxu0 0.0
    %1321 = vmatpush1.msra.mxu0 0.0
    %1322 = vmatprep.subr.mxu0 0.0
    %1323 = vmatpush1.msra.mxu0 0.0
    %1324 = vmatprep.subr.mxu0 0.0
    %1325 = vmatpush1.msra.mxu0 0.0
    %1326 = vmatprep.subr.mxu0 0.0
    %1327 = vmatpush1.msra.mxu0 0.0
    %1328 = vmatprep.subr.mxu0 0.0
    %1329 = vmatpush1.msra.mxu0 0.0
    %1330 = vmatprep.subr.mxu0 0.0
    %1331 = vmatpush1.msra.mxu0 0.0
    %1332 = vmatprep.subr.mxu0 0.0
    %1333 = vmatpush1.msra.mxu0 0.0
    %1334 = vmatprep.subr.mxu0 0.0
    %1335 = vmatpush1.msra.mxu0 0.0
    %1336 = vmatprep.subr.mxu0 0.0
    %1337 = vmatpush1.msra.mxu0 0.0
    %1338 = vmatprep.subr.mxu0 0.0
    %1339 = vmatpush1.msra.mxu0 0.0
    %1340 = vmatprep.subr.mxu0 0.0
    %1341 = vmatpush1.msra.mxu0 0.0
    %1342 = vmatprep.subr.mxu0 0.0
    %1343 = vmatpush1.msra.mxu0 0.0
    %1344 = vmatprep.subr.mxu0 0.0
    %1345 = vmatpush1.msra.mxu0 0.0
    %1346 = vmatprep.subr.mxu0 0.0
    %1347 = vmatpush1.msra.mxu0 0.0
    %1348 = vmatprep.mubr.f32.mxu0 0.0
    %1349 = vmatmul.mubr.f32.gmra.mrb[0].mxu0 %v1267
    %v1350 = vpop.f32.mrb[0].mxu0
    %v1351 = vadd.f32 0.0, %v1350
    %v1352 = vpop.f32.mrb[0].mxu0
    %1353 = vmatprep.mubr.f32.mxu0 0.0
    %1354 = vmatmul.mubr.f32.gmra.mrb[0].mxu0 %v1270
    %v1355 = vpop.f32.mrb[0].mxu0
    %v1356 = vadd.f32 0.0, %v1355
    %v1357 = vpop.f32.mrb[0].mxu0
    %1358 = vmatprep.mubr.f32.mxu0 0.0
    %1359 = vmatmul.mubr.f32.gmra.mrb[0].mxu0 %v1273
    %v1360 = vpop.f32.mrb[0].mxu0
    %v1361 = vadd.f32 0.0, %v1360
    %v1362 = vpop.f32.mrb[0].mxu0
    %1363 = vmatprep.mubr.f32.mxu0 0.0
    %1364 = vmatmul.mubr.f32.gmra.mrb[0].mxu0 %v1276
    %v1365 = vpop.f32.mrb[0].mxu0
    %v1366 = vadd.f32 0.0, %v1365
    %v1367 = vpop.f32.mrb[0].mxu0
    %1368 = vmatprep.mubr.f32.mxu0 0.0
    %1369 = vmatmul.mubr.f32.gmra.mrb[0].mxu0 %v1279
    %v1370 = vpop.f32.mrb[0].mxu0
    %v1371 = vadd.f32 0.0, %v1370
    %v1372 = vpop.f32.mrb[0].mxu0
    %1373 = vmatprep.mubr.f32.mxu0 0.0
    %1374 = vmatmul.mubr.f32.gmra.mrb[0].mxu0 %v1282
    %v1375 = vpop.f32.mrb[0].mxu0
    %v1376 = vadd.f32 0.0, %v1375
    %v1377 = vpop.f32.mrb[0].mxu0
    %1378 = vdwg.mxu0
    %v1379 = vadd.f32 %v1145, %v1351
    %v1380 = vadd.f32 %v1146, %v1356
    %v1381 = vadd.f32 %v1147, %v1361
    %v1382 = vadd.f32 %v1148, %v1366
    %v1383 = vadd.f32 %v1149, %v1371
    %v1384 = vadd.f32 %v1150, %v1376
    %v1385 = vld [vmem:[%s1 + $0x50] sm:$0xff]
    %v1386 = vld [vmem:[%s1 + $0x58] sm:$0xff]
    %s1387 = scalar_lea.vmem [#allocation2], 5
    %v1388 = vld [vmem:[%s1387] ss:$2 sm:$0xff]
    %s1389 = scalar_lea.vmem [#allocation2], 21
    %v1390 = vld [vmem:[%s1389] ss:$2 sm:$0xff]
    %s1391 = scalar_lea.vmem [#allocation2], 37
    %v1392 = vld [vmem:[%s1391] ss:$2 sm:$0xff]
    %s1393 = scalar_lea.vmem [#allocation2], 61
    %v1394 = vld [vmem:[%s1393] ss:$2 sm:$0xff]
    %s1395 = scalar_lea.vmem [#allocation2], 77
    %v1396 = vld [vmem:[%s1395] ss:$2 sm:$0xff]
    %s1397 = scalar_lea.vmem [#allocation2], 93
    %v1398 = vld [vmem:[%s1397] ss:$2 sm:$0xff]
    %1399 = vmatprep.subr.mxu0 0.0
    %1400 = vmatpush1.msra.mxu0 %v1385
    %1401 = vmatprep.subr.mxu0 0.0
    %1402 = vmatpush1.msra.mxu0 %v1386
    %1403 = vmatprep.subr.mxu0 0.0
    %1404 = vmatpush1.msra.mxu0 0.0
    %1405 = vmatprep.subr.mxu0 0.0
    %1406 = vmatpush1.msra.mxu0 0.0
    %1407 = vmatprep.subr.mxu0 0.0
    %1408 = vmatpush1.msra.mxu0 0.0
    %1409 = vmatprep.subr.mxu0 0.0
    %1410 = vmatpush1.msra.mxu0 0.0
    %1411 = vmatprep.subr.mxu0 0.0
    %1412 = vmatpush1.msra.mxu0 0.0
    %1413 = vmatprep.subr.mxu0 0.0
    %1414 = vmatpush1.msra.mxu0 0.0
    %1415 = vmatprep.subr.mxu0 0.0
    %1416 = vmatpush1.msra.mxu0 0.0
    %1417 = vmatprep.subr.mxu0 0.0
    %1418 = vmatpush1.msra.mxu0 0.0
    %1419 = vmatprep.subr.mxu0 0.0
    %1420 = vmatpush1.msra.mxu0 0.0
    %1421 = vmatprep.subr.mxu0 0.0
    %1422 = vmatpush1.msra.mxu0 0.0
    %1423 = vmatprep.subr.mxu0 0.0
    %1424 = vmatpush1.msra.mxu0 0.0
    %1425 = vmatprep.subr.mxu0 0.0
    %1426 = vmatpush1.msra.mxu0 0.0
    %1427 = vmatprep.subr.mxu0 0.0
    %1428 = vmatpush1.msra.mxu0 0.0
    %1429 = vmatprep.subr.mxu0 0.0
    %1430 = vmatpush1.msra.mxu0 0.0
    %1431 = vmatprep.subr.mxu0 0.0
    %1432 = vmatpush1.msra.mxu0 0.0
    %1433 = vmatprep.subr.mxu0 0.0
    %1434 = vmatpush1.msra.mxu0 0.0
    %1435 = vmatprep.subr.mxu0 0.0
    %1436 = vmatpush1.msra.mxu0 0.0
    %1437 = vmatprep.subr.mxu0 0.0
    %1438 = vmatpush1.msra.mxu0 0.0
    %1439 = vmatprep.subr.mxu0 0.0
    %1440 = vmatpush1.msra.mxu0 0.0
    %1441 = vmatprep.subr.mxu0 0.0
    %1442 = vmatpush1.msra.mxu0 0.0
    %1443 = vmatprep.subr.mxu0 0.0
    %1444 = vmatpush1.msra.mxu0 0.0
    %1445 = vmatprep.subr.mxu0 0.0
    %1446 = vmatpush1.msra.mxu0 0.0
    %1447 = vmatprep.subr.mxu0 0.0
    %1448 = vmatpush1.msra.mxu0 0.0
    %1449 = vmatprep.subr.mxu0 0.0
    %1450 = vmatpush1.msra.mxu0 0.0
    %1451 = vmatprep.subr.mxu0 0.0
    %1452 = vmatpush1.msra.mxu0 0.0
    %1453 = vmatprep.subr.mxu0 0.0
    %1454 = vmatpush1.msra.mxu0 0.0
    %1455 = vmatprep.subr.mxu0 0.0
    %1456 = vmatpush1.msra.mxu0 0.0
    %1457 = vmatprep.subr.mxu0 0.0
    %1458 = vmatpush1.msra.mxu0 0.0
    %1459 = vmatprep.subr.mxu0 0.0
    %1460 = vmatpush1.msra.mxu0 0.0
    %1461 = vmatprep.subr.mxu0 0.0
    %1462 = vmatpush1.msra.mxu0 0.0
    %1463 = vmatprep.mubr.f32.mxu0 0.0
    %1464 = vmatmul.mubr.f32.gmra.mrb[0].mxu0 %v1267
    %v1465 = vpop.f32.mrb[0].mxu0
    %v1466 = vadd.f32 0.0, %v1465
    %v1467 = vpop.f32.mrb[0].mxu0
    %1468 = vmatprep.mubr.f32.mxu0 0.0
    %1469 = vmatmul.mubr.f32.gmra.mrb[0].mxu0 %v1270
    %v1470 = vpop.f32.mrb[0].mxu0
    %v1471 = vadd.f32 0.0, %v1470
    %v1472 = vpop.f32.mrb[0].mxu0
    %1473 = vmatprep.mubr.f32.mxu0 0.0
    %1474 = vmatmul.mubr.f32.gmra.mrb[0].mxu0 %v1273
    %v1475 = vpop.f32.mrb[0].mxu0
    %v1476 = vadd.f32 0.0, %v1475
    %v1477 = vpop.f32.mrb[0].mxu0
    %1478 = vmatprep.mubr.f32.mxu0 0.0
    %1479 = vmatmul.mubr.f32.gmra.mrb[0].mxu0 %v1276
    %v1480 = vpop.f32.mrb[0].mxu0
    %v1481 = vadd.f32 0.0, %v1480
    %v1482 = vpop.f32.mrb[0].mxu0
    %1483 = vmatprep.mubr.f32.mxu0 0.0
    %1484 = vmatmul.mubr.f32.gmra.mrb[0].mxu0 %v1279
    %v1485 = vpop.f32.mrb[0].mxu0
    %v1486 = vadd.f32 0.0, %v1485
    %v1487 = vpop.f32.mrb[0].mxu0
    %1488 = vmatprep.mubr.f32.mxu0 0.0
    %1489 = vmatmul.mubr.f32.gmra.mrb[0].mxu0 %v1282
    %v1490 = vpop.f32.mrb[0].mxu0
    %v1491 = vadd.f32 0.0, %v1490
    %v1492 = vpop.f32.mrb[0].mxu0
    %1493 = vdwg.mxu0
    %v1494 = vadd.f32 %v1260, %v1466
    %v1495 = vadd.f32 %v1261, %v1471
    %v1496 = vadd.f32 %v1262, %v1476
    %v1497 = vadd.f32 %v1263, %v1481
    %v1498 = vadd.f32 %v1264, %v1486
    %v1499 = vadd.f32 %v1265, %v1491
    %v1501 = vsel %vm429, %v1388, 0
    %v1504 = vsel %vm429, %v1390, 0
    %v1507 = vsel %vm429, %v1392, 0
    %v1510 = vsel %vm429, %v1394, 0
    %v1513 = vsel %vm429, %v1396, 0
    %v1516 = vsel %vm429, %v1398, 0
    %1518 = vmatprep.subr.mxu0 0.0
    %1519 = vmatpush1.msra.mxu0 %v1385
    %1520 = vmatprep.subr.mxu0 0.0
    %1521 = vmatpush1.msra.mxu0 %v1386
    %1522 = vmatprep.subr.mxu0 0.0
    %1523 = vmatpush1.msra.mxu0 0.0
    %1524 = vmatprep.subr.mxu0 0.0
    %1525 = vmatpush1.msra.mxu0 0.0
    %1526 = vmatprep.subr.mxu0 0.0
    %1527 = vmatpush1.msra.mxu0 0.0
    %1528 = vmatprep.subr.mxu0 0.0
    %1529 = vmatpush1.msra.mxu0 0.0
    %1530 = vmatprep.subr.mxu0 0.0
    %1531 = vmatpush1.msra.mxu0 0.0
    %1532 = vmatprep.subr.mxu0 0.0
    %1533 = vmatpush1.msra.mxu0 0.0
    %1534 = vmatprep.subr.mxu0 0.0
    %1535 = vmatpush1.msra.mxu0 0.0
    %1536 = vmatprep.subr.mxu0 0.0
    %1537 = vmatpush1.msra.mxu0 0.0
    %1538 = vmatprep.subr.mxu0 0.0
    %1539 = vmatpush1.msra.mxu0 0.0
    %1540 = vmatprep.subr.mxu0 0.0
    %1541 = vmatpush1.msra.mxu0 0.0
    %1542 = vmatprep.subr.mxu0 0.0
    %1543 = vmatpush1.msra.mxu0 0.0
    %1544 = vmatprep.subr.mxu0 0.0
    %1545 = vmatpush1.msra.mxu0 0.0
    %1546 = vmatprep.subr.mxu0 0.0
    %1547 = vmatpush1.msra.mxu0 0.0
    %1548 = vmatprep.subr.mxu0 0.0
    %1549 = vmatpush1.msra.mxu0 0.0
    %1550 = vmatprep.subr.mxu0 0.0
    %1551 = vmatpush1.msra.mxu0 0.0
    %1552 = vmatprep.subr.mxu0 0.0
    %1553 = vmatpush1.msra.mxu0 0.0
    %1554 = vmatprep.subr.mxu0 0.0
    %1555 = vmatpush1.msra.mxu0 0.0
    %1556 = vmatprep.subr.mxu0 0.0
    %1557 = vmatpush1.msra.mxu0 0.0
    %1558 = vmatprep.subr.mxu0 0.0
    %1559 = vmatpush1.msra.mxu0 0.0
    %1560 = vmatprep.subr.mxu0 0.0
    %1561 = vmatpush1.msra.mxu0 0.0
    %1562 = vmatprep.subr.mxu0 0.0
    %1563 = vmatpush1.msra.mxu0 0.0
    %1564 = vmatprep.subr.mxu0 0.0
    %1565 = vmatpush1.msra.mxu0 0.0
    %1566 = vmatprep.subr.mxu0 0.0
    %1567 = vmatpush1.msra.mxu0 0.0
    %1568 = vmatprep.subr.mxu0 0.0
    %1569 = vmatpush1.msra.mxu0 0.0
    %1570 = vmatprep.subr.mxu0 0.0
    %1571 = vmatpush1.msra.mxu0 0.0
    %1572 = vmatprep.subr.mxu0 0.0
    %1573 = vmatpush1.msra.mxu0 0.0
    %1574 = vmatprep.subr.mxu0 0.0
    %1575 = vmatpush1.msra.mxu0 0.0
    %1576 = vmatprep.subr.mxu0 0.0
    %1577 = vmatpush1.msra.mxu0 0.0
    %1578 = vmatprep.subr.mxu0 0.0
    %1579 = vmatpush1.msra.mxu0 0.0
    %1580 = vmatprep.subr.mxu0 0.0
    %1581 = vmatpush1.msra.mxu0 0.0
    %1582 = vmatprep.mubr.f32.mxu0 0.0
    %1583 = vmatmul.mubr.f32.gmra.mrb[0].mxu0 %v1501
    %v1584 = vpop.f32.mrb[0].mxu0
    %v1585 = vadd.f32 0.0, %v1584
    %v1586 = vpop.f32.mrb[0].mxu0
    %1587 = vmatprep.mubr.f32.mxu0 0.0
    %1588 = vmatmul.mubr.f32.gmra.mrb[0].mxu0 %v1504
    %v1589 = vpop.f32.mrb[0].mxu0
    %v1590 = vadd.f32 0.0, %v1589
    %v1591 = vpop.f32.mrb[0].mxu0
    %1592 = vmatprep.mubr.f32.mxu0 0.0
    %1593 = vmatmul.mubr.f32.gmra.mrb[0].mxu0 %v1507
    %v1594 = vpop.f32.mrb[0].mxu0
    %v1595 = vadd.f32 0.0, %v1594
    %v1596 = vpop.f32.mrb[0].mxu0
    %1597 = vmatprep.mubr.f32.mxu0 0.0
    %1598 = vmatmul.mubr.f32.gmra.mrb[0].mxu0 %v1510
    %v1599 = vpop.f32.mrb[0].mxu0
    %v1600 = vadd.f32 0.0, %v1599
    %v1601 = vpop.f32.mrb[0].mxu0
    %1602 = vmatprep.mubr.f32.mxu0 0.0
    %1603 = vmatmul.mubr.f32.gmra.mrb[0].mxu0 %v1513
    %v1604 = vpop.f32.mrb[0].mxu0
    %v1605 = vadd.f32 0.0, %v1604
    %v1606 = vpop.f32.mrb[0].mxu0
    %1607 = vmatprep.mubr.f32.mxu0 0.0
    %1608 = vmatmul.mubr.f32.gmra.mrb[0].mxu0 %v1516
    %v1609 = vpop.f32.mrb[0].mxu0
    %v1610 = vadd.f32 0.0, %v1609
    %v1611 = vpop.f32.mrb[0].mxu0
    %1612 = vdwg.mxu0
    %v1613 = vadd.f32 %v1379, %v1585
    %v1614 = vadd.f32 %v1380, %v1590
    %v1615 = vadd.f32 %v1381, %v1595
    %v1616 = vadd.f32 %v1382, %v1600
    %v1617 = vadd.f32 %v1383, %v1605
    %v1618 = vadd.f32 %v1384, %v1610
    %v1619 = vmax.f32 %v1494, %v1613
    %v1620 = vmax.f32 %v1495, %v1614
    %v1621 = vmax.f32 %v1496, %v1615
    %v1622 = vmax.f32 %v1497, %v1616
    %v1623 = vmax.f32 %v1498, %v1617
    %v1624 = vmax.f32 %v1499, %v1618
    %v1625 = vlaneseq
    %v1626 = vshrl.u32 %v1625, 7
    %v1627 = vsub.s32 0, %v1626
    %v1628 = vrot.slane %v14, %v1627
    %v1629 = vadd.f32 %v1619, %v1628
    %v1630 = vadd.f32 %v1620, %v1628
    %v1631 = vadd.f32 %v1621, %v1628
    %v1632 = vadd.f32 %v1622, %v1628
    %v1633 = vadd.f32 %v1623, %v1628
    %v1634 = vadd.f32 %v1624, %v1628
    %v1635 = vmax.f32 %v1629, 0.0
    %v1636 = vmax.f32 %v1630, 0.0
    %v1637 = vmax.f32 %v1631, 0.0
    %v1638 = vmax.f32 %v1632, 0.0
    %v1639 = vmax.f32 %v1633, 0.0
    %v1640 = vmax.f32 %v1634, 0.0
    %v1641 = vld [vmem:[%s1 + $0x60] sm:$0xff]
    %v1642 = vld [vmem:[%s1 + $0x68] sm:$0xff]
    %v1643 = vld [vmem:[%s1 + $0x70] sm:$0xff]
    %v1644 = vld [vmem:[%s1 + $0x78] sm:$0xff]
    %v1645 = vld [vmem:[%s1 + $0x80] sm:$0xff]
    %v1646 = vld [vmem:[%s1 + $0x88] sm:$0xff]
    %v1647 = vmul.f32 %v1635, %v1641
    %v1648 = vmul.f32 %v1636, %v1642
    %v1649 = vmul.f32 %v1637, %v1643
    %v1650 = vmul.f32 %v1635, %v1644
    %v1651 = vmul.f32 %v1636, %v1645
    %v1652 = vmul.f32 %v1637, %v1646
    %v1653 = vmul.f32 %v1638, %v1641
    %v1654 = vmul.f32 %v1639, %v1642
    %v1655 = vmul.f32 %v1640, %v1643
    %v1656 = vmul.f32 %v1638, %v1644
    %v1657 = vmul.f32 %v1639, %v1645
    %v1658 = vmul.f32 %v1640, %v1646
    %vm1659 = vcmask 261120
    %v1660 = vsel %vm1659, %v1647, 0.0
    %1661 = vadd.xlane.f32.xlu0 %v1660
    %v1662 = vpop.xlane.xlu0 %1661
    %v1663 = vsel %vm1659, %v1648, 0.0
    %1664 = vadd.xlane.f32.xlu0 %v1663
    %v1665 = vpop.xlane.xlu0 %1664
    %v1666 = vsel %vm1659, %v1649, 0.0
    %1667 = vadd.xlane.f32.xlu0 %v1666
    %v1668 = vpop.xlane.xlu0 %1667
    %v1669 = vsel %vm1659, %v1650, 0.0
    %1670 = vadd.xlane.f32.xlu0 %v1669
    %v1671 = vpop.xlane.xlu0 %1670
    %v1672 = vsel %vm1659, %v1651, 0.0
    %1673 = vadd.xlane.f32.xlu0 %v1672
    %v1674 = vpop.xlane.xlu0 %1673
    %v1675 = vsel %vm1659, %v1652, 0.0
    %1676 = vadd.xlane.f32.xlu0 %v1675
    %v1677 = vpop.xlane.xlu0 %1676
    %v1678 = vsel %vm1659, %v1653, 0.0
    %1679 = vadd.xlane.f32.xlu0 %v1678
    %v1680 = vpop.xlane.xlu0 %1679
    %v1681 = vsel %vm1659, %v1654, 0.0
    %1682 = vadd.xlane.f32.xlu0 %v1681
    %v1683 = vpop.xlane.xlu0 %1682
    %v1684 = vsel %vm1659, %v1655, 0.0
    %1685 = vadd.xlane.f32.xlu0 %v1684
    %v1686 = vpop.xlane.xlu0 %1685
    %v1687 = vsel %vm1659, %v1656, 0.0
    %1688 = vadd.xlane.f32.xlu0 %v1687
    %v1689 = vpop.xlane.xlu0 %1688
    %v1690 = vsel %vm1659, %v1657, 0.0
    %1691 = vadd.xlane.f32.xlu0 %v1690
    %v1692 = vpop.xlane.xlu0 %1691
    %v1693 = vsel %vm1659, %v1658, 0.0
    %1694 = vadd.xlane.f32.xlu0 %v1693
    %v1695 = vpop.xlane.xlu0 %1694
    %v1708 = vlaneseq
    %v1709 = vand.u32 %v1708, 127
    %v1710 = vlaneseq
    %v1711 = vshrl.u32 %v1710, 7
    %v1712 = vsub.s32 %v1709, %v1711
    %v1713 = vrot.slane %v1662, %v1712
    %v1714 = vadd.s32 %v1709, 4294967288
    %v1715 = vlaneseq
    %v1716 = vshrl.u32 %v1715, 7
    %v1717 = vsub.s32 %v1714, %v1716
    %v1718 = vrot.slane %v1665, %v1717
    %vm1719 = vcmask 130112
    %v1720 = vsel %vm1719, %v1718, %v1713
    %v1721 = vadd.s32 %v1709, 4294967280
    %v1722 = vlaneseq
    %v1723 = vshrl.u32 %v1722, 7
    %v1724 = vsub.s32 %v1721, %v1723
    %v1725 = vrot.slane %v1668, %v1724
    %vm1726 = vcmask 195712
    %v1727 = vsel %vm1726, %v1725, %v1720
    %v1728 = vlaneseq
    %v1729 = vshrl.u32 %v1728, 7
    %v1730 = vsub.s32 %v1709, %v1729
    %v1731 = vrot.slane %v1671, %v1730
    %v1732 = vlaneseq
    %v1733 = vshrl.u32 %v1732, 7
    %v1734 = vsub.s32 %v1714, %v1733
    %v1735 = vrot.slane %v1674, %v1734
    %v1736 = vsel %vm1719, %v1735, %v1731
    %v1737 = vlaneseq
    %v1738 = vshrl.u32 %v1737, 7
    %v1739 = vsub.s32 %v1721, %v1738
    %v1740 = vrot.slane %v1677, %v1739
    %v1741 = vsel %vm1726, %v1740, %v1736
    %v1742 = vlaneseq
    %v1743 = vshrl.u32 %v1742, 7
    %v1744 = vsub.s32 %v1709, %v1743
    %v1745 = vrot.slane %v1680, %v1744
    %v1746 = vlaneseq
    %v1747 = vshrl.u32 %v1746, 7
    %v1748 = vsub.s32 %v1714, %v1747
    %v1749 = vrot.slane %v1683, %v1748
    %v1750 = vsel %vm1719, %v1749, %v1745
    %v1751 = vlaneseq
    %v1752 = vshrl.u32 %v1751, 7
    %v1753 = vsub.s32 %v1721, %v1752
    %v1754 = vrot.slane %v1686, %v1753
    %v1755 = vsel %vm1726, %v1754, %v1750
    %v1756 = vlaneseq
    %v1757 = vshrl.u32 %v1756, 7
    %v1758 = vsub.s32 %v1709, %v1757
    %v1759 = vrot.slane %v1689, %v1758
    %v1760 = vlaneseq
    %v1761 = vshrl.u32 %v1760, 7
    %v1762 = vsub.s32 %v1714, %v1761
    %v1763 = vrot.slane %v1692, %v1762
    %v1764 = vsel %vm1719, %v1763, %v1759
    %v1765 = vlaneseq
    %v1766 = vshrl.u32 %v1765, 7
    %v1767 = vsub.s32 %v1721, %v1766
    %v1768 = vrot.slane %v1695, %v1767
    %v1769 = vsel %vm1726, %v1768, %v1764
    %vm1770 = vcmask 1041409
    %v1771 = vsel %vm1770, %v1741, %v1727
    %v1772 = vsel %vm1770, %v1769, %v1755
    %vm1775 = vcmask 189440
    %v1776 = vsel %vm1775, %v1771, 0.0
    %1777 = vadd.xlane.f32.xlu0 %v1776
    %v1778 = vpop.xlane.xlu0 %1777
    %v1779 = vsel %vm1775, %v1772, 0.0
    %1780 = vadd.xlane.f32.xlu0 %v1779
    %v1781 = vpop.xlane.xlu0 %1780
    %v1782 = vlaneseq
    %v1783 = vshrl.u32 %v1782, 7
    %v1784 = vsub.s32 0, %v1783
    %v1785 = vrot.slane %v15, %v1784
    %1788 = vbcast.lane.b32.xlu0 %v1785, 256
    %v1789 = vpop.permute.xlu0 %1788
    %v1791 = vadd.f32 %v1778, %v1789
    %v1792 = vadd.f32 %v1781, %v1789
    %1795 = vset.pattern.permute.xlu0 0
    %1796 = vperm.xlu0 %1795, %v1791
    %v1797 = vpop.permute.xlu0 %1796
    %1798 = vset.pattern.permute.xlu0 0
    %1799 = vperm.xlu0 %1798, %v1792
    %v1800 = vpop.permute.xlu0 %1799
    %v1801 = vlaneseq
    %v1802 = vshrl.u32 %v1801, 7
    %v1803 = vsub.s32 %v1709, %v1802
    %v1804 = vrot.slane %v1797, %v1803
    %v1805 = vlaneseq
    %v1806 = vshrl.u32 %v1805, 7
    %v1807 = vsub.s32 %v1709, %v1806
    %v1808 = vrot.slane %v1800, %v1807
    %v1809 = vsel %vm1770, %v1808, %v1804
    %vm1811 = vcmask 9216
    %1812 = vst.msk [vmem:[#allocation3] sm:$0x3] %vm1811, %v1809
    // Predicated region
    $region10: #{cnn_forward.1} parent=1 // pred_check
      _
    $region11: #{cnn_forward.1} parent=1 // pred_check_branch
      %1814 = sbr.rel (0) target = $region13
    $region12: #{cnn_forward.1} parent=1 // pred_region
      %s1816 = ssub.s32 32, 32
      %1817 = vsyncadd [#allocation4], %s1816
      %s1819 = sshll.u32 [#allocation3], 4
      %s1820 = int_to_ptr.vmem [resolvable:$true] %s1819
      %1822 = dma.vmem_to_hbm [thread:$0]  %s1820, 32, %s2, [#allocation4]
    $region13: #{cnn_forward.1} parent=1 // pred_fallthru
      _
    // Predicated region
    $region14: #{cnn_forward.1} parent=1 // pred_check
      _
    $region15: #{cnn_forward.1} parent=1 // pred_check_branch
      %1824 = sbr.rel (0) target = $region17
    $region16: #{cnn_forward.1} parent=1 // pred_region
      %1825 = dma.done [#allocation4], 32
    $region17: #{cnn_forward.1} parent=1 // pred_fallthru
      _
    %1826 = vsyncpa [#allocation4], 1

</llo_original>
